<compile_context>
chip_gen: v7x
topology: tpu7x:2x2x1
jax: 0.10.0
libtpu: 0.0.40
codegen_flags: <defaults>
</compile_context>

<pallas_src>
import functools

import jax
import jax.numpy as jnp
from jax.experimental import pallas as pl
from jax.experimental.pallas import tpu as pltpu


def channel_attention_kernel(x_ref, wqkv_ref, wproj_ref, bproj_ref, mask_ref,
                             o_ref, *, num_heads, head_batched):
    bt, n, c = x_ref.shape
    dt = x_ref.dtype
    d = c // num_heads

    # qkv projections: three lane-dense 2-D MXU matmuls over all packed rows.
    # (reshape (bt, N, C) <-> (bt*N, C) is layout-free when N % 8 == 0.)
    x = x_ref[...].reshape(bt * n, c)
    q = jnp.dot(x, wqkv_ref[0], preferred_element_type=jnp.float32)
    k = jnp.dot(x, wqkv_ref[1], preferred_element_type=jnp.float32)  # scale folded into Wk
    v = jnp.dot(x, wqkv_ref[2], preferred_element_type=jnp.float32)
    q = q.astype(dt).reshape(bt, n, c)
    k = k.astype(dt).reshape(bt, n, c)
    v = v.astype(dt).reshape(bt, n, c)

    def block_softmax(logits_f32):
        # logits must stay f32: the -1e30 mask bias would overflow bf16.
        m = jnp.max(logits_f32, axis=-1, keepdims=True)
        p = jnp.exp(logits_f32 - m)
        denom = jnp.sum(p, axis=-1, keepdims=True)
        return p * pl.reciprocal(denom, approx=True)

    if not head_batched:
        # Dense block-diagonal channel attention (d < 128): one batched (C, C)
        # matmul, mask cross-head entries (exactly zero after softmax), one
        # batched Q @ A^T.  Keeps every matmul lane-dense with no per-head
        # slicing / concat.
        logits = jnp.einsum('bnc,bnd->bcd', k, v,
                            preferred_element_type=jnp.float32)      # (bt, C, C)
        attn = block_softmax(logits + mask_ref[...])                 # f32
        y = jnp.einsum('bnc,bdc->bnd', q, attn.astype(dt),
                       preferred_element_type=jnp.float32)           # (bt, N, C)
    else:
        # d is a multiple of 128: per-head matmuls are already lane-dense and
        # the masked dense form would inflate MXU flops by num_heads x.
        # Head slices / concat are 128-aligned, so no relayout copies.
        ys = []
        for h in range(num_heads):
            sl = slice(h * d, (h + 1) * d)
            lg = jnp.einsum('bnc,bnd->bcd', k[:, :, sl], v[:, :, sl],
                            preferred_element_type=jnp.float32)      # (bt, d, d)
            ah = block_softmax(lg)
            ys.append(jnp.einsum('bnc,bdc->bnd', q[:, :, sl], ah.astype(dt),
                                 preferred_element_type=jnp.float32))
        y = jnp.concatenate(ys, axis=-1)                             # (bt, N, C)

    # Output projection + bias: one lane-dense MXU matmul for the whole block.
    out = jnp.dot(y.astype(dt).reshape(bt * n, c), wproj_ref[...],
                  preferred_element_type=jnp.float32)
    out = out + bproj_ref[...].astype(jnp.float32)
    o_ref[...] = out.reshape(bt, n, c).astype(o_ref.dtype)


def _vmem_budgets():
    """Generation-aware (v5e/v6e: 128 MiB, v7x: 64 MiB) VMEM policy."""
    phys = 64 * 1024 * 1024          # conservative default (v7x per-TC)
    try:
        phys = int(getattr(pltpu.get_tpu_info(), "vmem_capacity_bytes", phys))
    except Exception:
        pass
    step_budget = min(max(phys // 5, 8 * 1024 * 1024), 24 * 1024 * 1024)
    vmem_limit = int(min(phys * 3 // 4, 96 * 1024 * 1024))
    return step_budget, vmem_limit


def _pick_batch_tile(B, N, C, itemsize, step_budget):
    """How many batch elements to pack per grid step.

    Goals: (a) >= 1024 MXU rows per projection matmul when possible,
    (b) stay inside the per-step VMEM budget, (c) keep the grid length >= 2
    when B >= 2 so both v7x TensorCores (and pipelining) stay busy.
    """
    def step_bytes(bt):
        act = bt * N * C * (4 * itemsize + 4 * 4 + 4)   # dbl-buffered x/out + q,k,v,y (f32) + out
        attn = bt * C * C * 8                           # logits + attn (f32)
        wgt = (4 * C * C + C) * itemsize + C * C * 4    # weights + bias + mask (single-buffered)
        return act + attn + wgt

    max_bt = B if B == 1 else B // 2
    bt = 1
    for cand in range(2, max_bt + 1):
        if B % cand:
            continue
        if step_bytes(cand) > step_budget:
            break
        bt = cand
        if cand * N >= 1024:
            break
    return bt


def channel_attention(x, w_qkv_t, w_proj_t, b_proj, num_heads):
    """x: (B, N, C); w_qkv_t: (C, 3C); w_proj_t: (C, C); b_proj: (C,)."""
    B, N, C = x.shape
    assert C % num_heads == 0
    d = C // num_heads
    scale = float(d ** (-0.5))
    head_batched = (d % 128 == 0)
    dt = x.dtype

    # One-time weight transform: split qkv, fold the attention scale into Wk.
    wq = w_qkv_t[:, 0:C]
    wk = (w_qkv_t[:, C:2 * C].astype(jnp.float32) * scale).astype(w_qkv_t.dtype)
    wv = w_qkv_t[:, 2 * C:3 * C]
    w_stack = jnp.stack([wq, wk, wv], axis=0).astype(dt)        # (3, C, C)
    w_proj = w_proj_t.astype(dt)                                # (C, C)
    b_proj2 = b_proj.reshape(1, C).astype(jnp.float32)          # (1, C)

    # Block-diagonal head mask (f32), built once and DMA'd once by the kernel.
    ch = jnp.arange(C, dtype=jnp.int32) // d
    mask = jnp.where(ch[:, None] == ch[None, :], 0.0, -1e30).astype(jnp.float32)

    step_budget, vmem_limit = _vmem_budgets()
    bt = _pick_batch_tile(B, N, C, jnp.dtype(dt).itemsize, step_budget)

    kernel = functools.partial(channel_attention_kernel,
                               num_heads=num_heads, head_batched=head_batched)

    def make_call(single_buffer_consts):
        def const_spec(shape, index_map):
            if single_buffer_consts:
                return pl.BlockSpec(shape, index_map,
                                    pipeline_mode=pl.Buffered(1))
            return pl.BlockSpec(shape, index_map)

        return pl.pallas_call(
            kernel,
            out_shape=jax.ShapeDtypeStruct((B, N, C), dt),
            grid=(B // bt,),
            in_specs=[
                pl.BlockSpec((bt, N, C), lambda i: (i, 0, 0)),
                const_spec((3, C, C), lambda i: (0, 0, 0)),
                const_spec((C, C), lambda i: (0, 0)),
                const_spec((1, C), lambda i: (0, 0)),
                const_spec((C, C), lambda i: (0, 0)),
            ],
            out_specs=pl.BlockSpec((bt, N, C), lambda i: (i, 0, 0)),
            compiler_params=pltpu.CompilerParams(
                dimension_semantics=("parallel",),
                vmem_limit_bytes=vmem_limit,
            ),
        )

    args = (x, w_stack, w_proj, b_proj2, mask)
    try:
        # Constant blocks single-buffered (halves their resident VMEM).
        return make_call(True)(*args)
    except Exception:
        # Older jax without pipeline_mode support: plain double-buffered consts.
        return make_call(False)(*args)


def channel_attention_ref(x, w_qkv_t, w_proj_t, b_proj, num_heads):
    """Pure-JAX reference mirroring the PyTorch forward, for verification."""
    B, N, C = x.shape
    d = C // num_heads
    scale = d ** (-0.5)
    qkv = x @ w_qkv_t                                    # (B, N, 3C)
    qkv = qkv.reshape(B, N, 3, num_heads, d).transpose(2, 0, 3, 1, 4)
    q, k, v = qkv[0], qkv[1], qkv[2]                     # (B, H, N, d)
    k = k * scale
    attn = jnp.swapaxes(k, -1, -2) @ v                   # (B, H, d, d)
    attn = jax.nn.softmax(attn, axis=-1)
    out = attn @ jnp.swapaxes(q, -1, -2)                 # (B, H, d, N)
    out = jnp.swapaxes(out, -1, -2)                      # (B, H, N, d)
    out = jnp.swapaxes(out, 1, 2).reshape(B, N, C)       # (B, N, C)
    return out @ w_proj_t + b_proj


def _run_case(key, B, N, C, H, dtype=jnp.float32, atol=2e-3, rtol=2e-3):
    kx, kw1, kw2, kb = jax.random.split(key, 4)
    x = jax.random.normal(kx, (B, N, C), dtype=jnp.float32)
    # nn.Linear(C, 3C, bias=False): weight (3C, C). We pass the transpose (C, 3C).
    w_qkv = jax.random.normal(kw1, (3 * C, C), dtype=jnp.float32) * 0.05
    # nn.Linear(C, C): weight (C, C) + bias (C,). We pass the transpose.
    w_proj = jax.random.normal(kw2, (C, C), dtype=jnp.float32) * 0.05
    b_proj = jax.random.normal(kb, (C,), dtype=jnp.float32) * 0.05

    xd = x.astype(dtype)
    wqkv_t = w_qkv.T.astype(dtype)
    wproj_t = w_proj.T.astype(dtype)
    bp = b_proj.astype(dtype)

    out = jax.block_until_ready(channel_attention(xd, wqkv_t, wproj_t, bp, H))

    # f32 reference on the same (possibly bf16-rounded) inputs.
    ref = channel_attention_ref(xd.astype(jnp.float32),
                                wqkv_t.astype(jnp.float32),
                                wproj_t.astype(jnp.float32),
                                bp.astype(jnp.float32), H)
    assert out.shape == (B, N, C) and out.dtype == dtype
    assert jnp.allclose(out.astype(jnp.float32), ref, atol=atol, rtol=rtol), \
        f"mismatch vs reference at (B,N,C,H,dtype)=({B},{N},{C},{H},{dtype})"


if __name__ == "__main__":
    key = jax.random.PRNGKey(0)
    k1, k2, k3, k4 = jax.random.split(key, 4)
    # Small shape matching the module's (B, N, C) contract (C < 128 path).
    _run_case(k1, B=2, N=8, C=32, H=8)
    # Lane-aligned shape exercising the dense block-diagonal fast path.
    _run_case(k2, B=2, N=128, C=128, H=8)
    # d == 128: exercises the per-head (lane-aligned) fallback path.
    _run_case(k3, B=2, N=64, C=256, H=2)
    # bf16 inputs/weights (f32 accumulation inside the kernel), looser tol.
    _run_case(k4, B=2, N=128, C=128, H=8, dtype=jnp.bfloat16,
              atol=3e-2, rtol=3e-2)
    print("KERNEL_OK")
</pallas_src>

<mosaic_0001>
module attributes {stable_mosaic.version = 11 : i64} {
  func.func @channel_attention_kernel(%arg0: i32, %arg1: memref<1x8x32xf32, #tpu.memory_space<vmem>>, %arg2: memref<3x32x32xf32, #tpu.memory_space<vmem>>, %arg3: memref<32x32xf32, #tpu.memory_space<vmem>>, %arg4: memref<1x32xf32, #tpu.memory_space<vmem>>, %arg5: memref<32x32xf32, #tpu.memory_space<vmem>>, %arg6: memref<1x8x32xf32, #tpu.memory_space<vmem>>) attributes {dimension_semantics = [#tpu.dimension_semantics<parallel>], iteration_bounds = array<i64: 2>, scalar_prefetch = 0 : i64, scratch_operands = 0 : i64, tpu.core_type = #tpu.core_type<tc>, window_params = [{transform_indices = @transform_0, window_bounds = array<i64: 1, 8, 32>}, {pipeline_mode = #tpu.pipeline_mode<synchronous>, transform_indices = @transform_1, window_bounds = array<i64: 3, 32, 32>}, {pipeline_mode = #tpu.pipeline_mode<synchronous>, transform_indices = @transform_2, window_bounds = array<i64: 32, 32>}, {pipeline_mode = #tpu.pipeline_mode<synchronous>, transform_indices = @transform_3, window_bounds = array<i64: 1, 32>}, {pipeline_mode = #tpu.pipeline_mode<synchronous>, transform_indices = @transform_4, window_bounds = array<i64: 32, 32>}, {transform_indices = @transform_5, window_bounds = array<i64: 1, 8, 32>}]} {
    %c0 = arith.constant 0 : index
    %c0_0 = arith.constant 0 : index
    %c0_1 = arith.constant 0 : index
    %0 = vector.load %arg1[%c0, %c0_0, %c0_1] : memref<1x8x32xf32, #tpu.memory_space<vmem>>, vector<1x8x32xf32>
    %1 = vector.shape_cast %0 : vector<1x8x32xf32> to vector<8x32xf32>
    %c0_2 = arith.constant 0 : index
    %c0_3 = arith.constant 0 : index
    %c0_4 = arith.constant 0 : index
    %2 = vector.load %arg2[%c0_2, %c0_3, %c0_4] : memref<3x32x32xf32, #tpu.memory_space<vmem>>, vector<1x32x32xf32>
    %3 = vector.shape_cast %2 : vector<1x32x32xf32> to vector<32x32xf32>
    %cst = arith.constant dense<0.000000e+00> : vector<8x32xf32>
    %4 = tpu.matmul %1, %3, %cst {dimension_numbers = #tpu.dot_dimension_numbers<[1], [0], [0], [1], [0, 0, 1, 1], [], []>} : vector<8x32xf32>, vector<32x32xf32>, vector<8x32xf32> -> vector<8x32xf32>
    %c1 = arith.constant 1 : index
    %c0_5 = arith.constant 0 : index
    %c0_6 = arith.constant 0 : index
    %5 = vector.load %arg2[%c1, %c0_5, %c0_6] : memref<3x32x32xf32, #tpu.memory_space<vmem>>, vector<1x32x32xf32>
    %6 = vector.shape_cast %5 : vector<1x32x32xf32> to vector<32x32xf32>
    %cst_7 = arith.constant dense<0.000000e+00> : vector<8x32xf32>
    %7 = tpu.matmul %1, %6, %cst_7 {dimension_numbers = #tpu.dot_dimension_numbers<[1], [0], [0], [1], [0, 0, 1, 1], [], []>} : vector<8x32xf32>, vector<32x32xf32>, vector<8x32xf32> -> vector<8x32xf32>
    %c2 = arith.constant 2 : index
    %c0_8 = arith.constant 0 : index
    %c0_9 = arith.constant 0 : index
    %8 = vector.load %arg2[%c2, %c0_8, %c0_9] : memref<3x32x32xf32, #tpu.memory_space<vmem>>, vector<1x32x32xf32>
    %9 = vector.shape_cast %8 : vector<1x32x32xf32> to vector<32x32xf32>
    %cst_10 = arith.constant dense<0.000000e+00> : vector<8x32xf32>
    %10 = tpu.matmul %1, %9, %cst_10 {dimension_numbers = #tpu.dot_dimension_numbers<[1], [0], [0], [1], [0, 0, 1, 1], [], []>} : vector<8x32xf32>, vector<32x32xf32>, vector<8x32xf32> -> vector<8x32xf32>
    %11 = vector.shape_cast %4 : vector<8x32xf32> to vector<1x8x32xf32>
    %12 = vector.shape_cast %7 : vector<8x32xf32> to vector<1x8x32xf32>
    %13 = vector.shape_cast %10 : vector<8x32xf32> to vector<1x8x32xf32>
    "tpu.trace_start"() <{level = 10 : i32, message = "bnc,bnd->bcd"}> : () -> ()
    %cst_11 = arith.constant dense<0.000000e+00> : vector<1x32x32xf32>
    %14 = tpu.matmul %12, %13, %cst_11 {dimension_numbers = #tpu.dot_dimension_numbers<[1], [1], [2], [2], [0, 0, 0, 2, 1, 2], [0], [0]>} : vector<1x8x32xf32>, vector<1x8x32xf32>, vector<1x32x32xf32> -> vector<1x32x32xf32>
    "tpu.trace_stop"() : () -> ()
    %c0_12 = arith.constant 0 : index
    %c0_13 = arith.constant 0 : index
    %15 = vector.load %arg5[%c0_12, %c0_13] : memref<32x32xf32, #tpu.memory_space<vmem>>, vector<32x32xf32>
    %16 = vector.shape_cast %15 : vector<32x32xf32> to vector<1x32x32xf32>
    %17 = arith.addf %14, %16 : vector<1x32x32xf32>
    %cst_14 = arith.constant dense<0xFF800000> : vector<1x32xf32>
    %18 = vector.multi_reduction <maximumf>, %17, %cst_14 [2] : vector<1x32x32xf32> to vector<1x32xf32>
    %19 = vector.shape_cast %18 : vector<1x32xf32> to vector<1x32x1xf32>
    %20 = vector.broadcast %19 : vector<1x32x1xf32> to vector<1x32x32xf32>
    %21 = arith.subf %17, %20 : vector<1x32x32xf32>
    %22 = math.exp %21 : vector<1x32x32xf32>
    %cst_15 = arith.constant dense<0.000000e+00> : vector<1x32xf32>
    %23 = vector.multi_reduction <add>, %22, %cst_15 [2] : vector<1x32x32xf32> to vector<1x32xf32>
    %24 = vector.shape_cast %23 : vector<1x32xf32> to vector<1x32x1xf32>
    %25 = tpu.reciprocal %24 {approx = true} : vector<1x32x1xf32> -> vector<1x32x1xf32>
    %26 = vector.broadcast %25 : vector<1x32x1xf32> to vector<1x32x32xf32>
    %27 = arith.mulf %22, %26 : vector<1x32x32xf32>
    "tpu.trace_start"() <{level = 10 : i32, message = "bnc,bdc->bnd"}> : () -> ()
    %cst_16 = arith.constant dense<0.000000e+00> : vector<1x8x32xf32>
    %28 = tpu.matmul %11, %27, %cst_16 {dimension_numbers = #tpu.dot_dimension_numbers<[2], [2], [1], [1], [0, 0, 0, 1, 1, 1], [0], [0]>} : vector<1x8x32xf32>, vector<1x32x32xf32>, vector<1x8x32xf32> -> vector<1x8x32xf32>
    "tpu.trace_stop"() : () -> ()
    %29 = vector.shape_cast %28 : vector<1x8x32xf32> to vector<8x32xf32>
    %c0_17 = arith.constant 0 : index
    %c0_18 = arith.constant 0 : index
    %30 = vector.load %arg3[%c0_17, %c0_18] : memref<32x32xf32, #tpu.memory_space<vmem>>, vector<32x32xf32>
    %cst_19 = arith.constant dense<0.000000e+00> : vector<8x32xf32>
    %31 = tpu.matmul %29, %30, %cst_19 {dimension_numbers = #tpu.dot_dimension_numbers<[1], [0], [0], [1], [0, 0, 1, 1], [], []>} : vector<8x32xf32>, vector<32x32xf32>, vector<8x32xf32> -> vector<8x32xf32>
    %c0_20 = arith.constant 0 : index
    %c0_21 = arith.constant 0 : index
    %32 = vector.load %arg4[%c0_20, %c0_21] : memref<1x32xf32, #tpu.memory_space<vmem>>, vector<1x32xf32>
    %33 = vector.broadcast %32 : vector<1x32xf32> to vector<8x32xf32>
    %34 = arith.addf %31, %33 : vector<8x32xf32>
    %35 = vector.shape_cast %34 : vector<8x32xf32> to vector<1x8x32xf32>
    %c0_22 = arith.constant 0 : index
    %c0_23 = arith.constant 0 : index
    %c0_24 = arith.constant 0 : index
    %36 = vector.load %arg6[%c0_22, %c0_23, %c0_24] : memref<1x8x32xf32, #tpu.memory_space<vmem>>, vector<1x8x32xf32>
    tpu.vector_store %arg6[%c0_22, %c0_23, %c0_24], %35 {strides = array<i32>} : memref<1x8x32xf32, #tpu.memory_space<vmem>>, vector<1x8x32xf32>,
    return
  }
  func.func @transform_0(%arg0: i32) -> (i32, i32, i32) {
    %c0_i32 = arith.constant 0 : i32
    %c0_i32_0 = arith.constant 0 : i32
    %c0_i32_1 = arith.constant 0 : i32
    return %arg0, %c0_i32, %c0_i32_0 : i32, i32, i32
  }
  func.func @transform_1(%arg0: i32) -> (i32, i32, i32) {
    %c0_i32 = arith.constant 0 : i32
    %c0_i32_0 = arith.constant 0 : i32
    %c0_i32_1 = arith.constant 0 : i32
    %c0_i32_2 = arith.constant 0 : i32
    return %c0_i32, %c0_i32_0, %c0_i32_1 : i32, i32, i32
  }
  func.func @transform_2(%arg0: i32) -> (i32, i32) {
    %c0_i32 = arith.constant 0 : i32
    %c0_i32_0 = arith.constant 0 : i32
    %c0_i32_1 = arith.constant 0 : i32
    return %c0_i32, %c0_i32_0 : i32, i32
  }
  func.func @transform_3(%arg0: i32) -> (i32, i32) {
    %c0_i32 = arith.constant 0 : i32
    %c0_i32_0 = arith.constant 0 : i32
    %c0_i32_1 = arith.constant 0 : i32
    return %c0_i32, %c0_i32_0 : i32, i32
  }
  func.func @transform_4(%arg0: i32) -> (i32, i32) {
    %c0_i32 = arith.constant 0 : i32
    %c0_i32_0 = arith.constant 0 : i32
    %c0_i32_1 = arith.constant 0 : i32
    return %c0_i32, %c0_i32_0 : i32, i32
  }
  func.func @transform_5(%arg0: i32) -> (i32, i32, i32) {
    %c0_i32 = arith.constant 0 : i32
    %c0_i32_0 = arith.constant 0 : i32
    %c0_i32_1 = arith.constant 0 : i32
    return %arg0, %c0_i32, %c0_i32_0 : i32, i32, i32
  }
}

module attributes {stable_mosaic.version = 11 : i64} {
  func.func @channel_attention_kernel(%arg0: i32, %arg1: memref<1x8x32xf32, #tpu.memory_space<vmem>>, %arg2: memref<3x32x32xf32, #tpu.memory_space<vmem>>, %arg3: memref<32x32xf32, #tpu.memory_space<vmem>>, %arg4: memref<1x32xf32, #tpu.memory_space<vmem>>, %arg5: memref<32x32xf32, #tpu.memory_space<vmem>>, %arg6: memref<1x8x32xf32, #tpu.memory_space<vmem>>) attributes {dimension_semantics = [#tpu.dimension_semantics<parallel>], iteration_bounds = array<i64: 2>, scalar_prefetch = 0 : i64, scratch_operands = 0 : i64, tpu.core_type = #tpu.core_type<tc>, window_params = [{transform_indices = @transform_0, window_bounds = array<i64: 1, 8, 32>}, {pipeline_mode = #tpu.pipeline_mode<synchronous>, transform_indices = @transform_1, window_bounds = array<i64: 3, 32, 32>}, {pipeline_mode = #tpu.pipeline_mode<synchronous>, transform_indices = @transform_2, window_bounds = array<i64: 32, 32>}, {pipeline_mode = #tpu.pipeline_mode<synchronous>, transform_indices = @transform_3, window_bounds = array<i64: 1, 32>}, {pipeline_mode = #tpu.pipeline_mode<synchronous>, transform_indices = @transform_4, window_bounds = array<i64: 32, 32>}, {transform_indices = @transform_5, window_bounds = array<i64: 1, 8, 32>}]} {
    %c0 = arith.constant 0 : index
    %c0_0 = arith.constant 0 : index
    %c0_1 = arith.constant 0 : index
    %0 = vector.load %arg1[%c0, %c0_0, %c0_1] : memref<1x8x32xf32, #tpu.memory_space<vmem>>, vector<1x8x32xf32>
    %1 = vector.shape_cast %0 : vector<1x8x32xf32> to vector<8x32xf32>
    %c0_2 = arith.constant 0 : index
    %c0_3 = arith.constant 0 : index
    %c0_4 = arith.constant 0 : index
    %2 = vector.load %arg2[%c0_2, %c0_3, %c0_4] : memref<3x32x32xf32, #tpu.memory_space<vmem>>, vector<1x32x32xf32>
    %3 = vector.shape_cast %2 : vector<1x32x32xf32> to vector<32x32xf32>
    %cst = arith.constant dense<0.000000e+00> : vector<8x32xf32>
    %4 = tpu.matmul %1, %3, %cst {dimension_numbers = #tpu.dot_dimension_numbers<[1], [0], [0], [1], [0, 0, 1, 1], [], []>} : vector<8x32xf32>, vector<32x32xf32>, vector<8x32xf32> -> vector<8x32xf32>
    %c1 = arith.constant 1 : index
    %c0_5 = arith.constant 0 : index
    %c0_6 = arith.constant 0 : index
    %5 = vector.load %arg2[%c1, %c0_5, %c0_6] : memref<3x32x32xf32, #tpu.memory_space<vmem>>, vector<1x32x32xf32>
    %6 = vector.shape_cast %5 : vector<1x32x32xf32> to vector<32x32xf32>
    %cst_7 = arith.constant dense<0.000000e+00> : vector<8x32xf32>
    %7 = tpu.matmul %1, %6, %cst_7 {dimension_numbers = #tpu.dot_dimension_numbers<[1], [0], [0], [1], [0, 0, 1, 1], [], []>} : vector<8x32xf32>, vector<32x32xf32>, vector<8x32xf32> -> vector<8x32xf32>
    %c2 = arith.constant 2 : index
    %c0_8 = arith.constant 0 : index
    %c0_9 = arith.constant 0 : index
    %8 = vector.load %arg2[%c2, %c0_8, %c0_9] : memref<3x32x32xf32, #tpu.memory_space<vmem>>, vector<1x32x32xf32>
    %9 = vector.shape_cast %8 : vector<1x32x32xf32> to vector<32x32xf32>
    %cst_10 = arith.constant dense<0.000000e+00> : vector<8x32xf32>
    %10 = tpu.matmul %1, %9, %cst_10 {dimension_numbers = #tpu.dot_dimension_numbers<[1], [0], [0], [1], [0, 0, 1, 1], [], []>} : vector<8x32xf32>, vector<32x32xf32>, vector<8x32xf32> -> vector<8x32xf32>
    %11 = vector.shape_cast %4 : vector<8x32xf32> to vector<1x8x32xf32>
    %12 = vector.shape_cast %7 : vector<8x32xf32> to vector<1x8x32xf32>
    %13 = vector.shape_cast %10 : vector<8x32xf32> to vector<1x8x32xf32>
    "tpu.trace_start"() <{level = 10 : i32, message = "bnc,bnd->bcd"}> : () -> ()
    %cst_11 = arith.constant dense<0.000000e+00> : vector<1x32x32xf32>
    %14 = tpu.matmul %12, %13, %cst_11 {dimension_numbers = #tpu.dot_dimension_numbers<[1], [1], [2], [2], [0, 0, 0, 2, 1, 2], [0], [0]>} : vector<1x8x32xf32>, vector<1x8x32xf32>, vector<1x32x32xf32> -> vector<1x32x32xf32>
    "tpu.trace_stop"() : () -> ()
    %c0_12 = arith.constant 0 : index
    %c0_13 = arith.constant 0 : index
    %15 = vector.load %arg5[%c0_12, %c0_13] : memref<32x32xf32, #tpu.memory_space<vmem>>, vector<32x32xf32>
    %16 = vector.shape_cast %15 : vector<32x32xf32> to vector<1x32x32xf32>
    %17 = arith.addf %14, %16 : vector<1x32x32xf32>
    %cst_14 = arith.constant dense<0xFF800000> : vector<1x32xf32>
    %18 = vector.multi_reduction <maximumf>, %17, %cst_14 [2] : vector<1x32x32xf32> to vector<1x32xf32>
    %19 = vector.shape_cast %18 : vector<1x32xf32> to vector<1x32x1xf32>
    %20 = vector.broadcast %19 : vector<1x32x1xf32> to vector<1x32x32xf32>
    %21 = arith.subf %17, %20 : vector<1x32x32xf32>
    %22 = math.exp %21 : vector<1x32x32xf32>
    %cst_15 = arith.constant dense<0.000000e+00> : vector<1x32xf32>
    %23 = vector.multi_reduction <add>, %22, %cst_15 [2] : vector<1x32x32xf32> to vector<1x32xf32>
    %24 = vector.shape_cast %23 : vector<1x32xf32> to vector<1x32x1xf32>
    %25 = tpu.reciprocal %24 {approx = true} : vector<1x32x1xf32> -> vector<1x32x1xf32>
    %26 = vector.broadcast %25 : vector<1x32x1xf32> to vector<1x32x32xf32>
    %27 = arith.mulf %22, %26 : vector<1x32x32xf32>
    "tpu.trace_start"() <{level = 10 : i32, message = "bnc,bdc->bnd"}> : () -> ()
    %cst_16 = arith.constant dense<0.000000e+00> : vector<1x8x32xf32>
    %28 = tpu.matmul %11, %27, %cst_16 {dimension_numbers = #tpu.dot_dimension_numbers<[2], [2], [1], [1], [0, 0, 0, 1, 1, 1], [0], [0]>} : vector<1x8x32xf32>, vector<1x32x32xf32>, vector<1x8x32xf32> -> vector<1x8x32xf32>
    "tpu.trace_stop"() : () -> ()
    %29 = vector.shape_cast %28 : vector<1x8x32xf32> to vector<8x32xf32>
    %c0_17 = arith.constant 0 : index
    %c0_18 = arith.constant 0 : index
    %30 = vector.load %arg3[%c0_17, %c0_18] : memref<32x32xf32, #tpu.memory_space<vmem>>, vector<32x32xf32>
    %cst_19 = arith.constant dense<0.000000e+00> : vector<8x32xf32>
    %31 = tpu.matmul %29, %30, %cst_19 {dimension_numbers = #tpu.dot_dimension_numbers<[1], [0], [0], [1], [0, 0, 1, 1], [], []>} : vector<8x32xf32>, vector<32x32xf32>, vector<8x32xf32> -> vector<8x32xf32>
    %c0_20 = arith.constant 0 : index
    %c0_21 = arith.constant 0 : index
    %32 = vector.load %arg4[%c0_20, %c0_21] : memref<1x32xf32, #tpu.memory_space<vmem>>, vector<1x32xf32>
    %33 = vector.broadcast %32 : vector<1x32xf32> to vector<8x32xf32>
    %34 = arith.addf %31, %33 : vector<8x32xf32>
    %35 = vector.shape_cast %34 : vector<8x32xf32> to vector<1x8x32xf32>
    %c0_22 = arith.constant 0 : index
    %c0_23 = arith.constant 0 : index
    %c0_24 = arith.constant 0 : index
    %36 = vector.load %arg6[%c0_22, %c0_23, %c0_24] : memref<1x8x32xf32, #tpu.memory_space<vmem>>, vector<1x8x32xf32>
    tpu.vector_store %arg6[%c0_22, %c0_23, %c0_24], %35 {strides = array<i32>} : memref<1x8x32xf32, #tpu.memory_space<vmem>>, vector<1x8x32xf32>,
    return
  }
  func.func @transform_0(%arg0: i32) -> (i32, i32, i32) {
    %c0_i32 = arith.constant 0 : i32
    %c0_i32_0 = arith.constant 0 : i32
    %c0_i32_1 = arith.constant 0 : i32
    return %arg0, %c0_i32, %c0_i32_0 : i32, i32, i32
  }
  func.func @transform_1(%arg0: i32) -> (i32, i32, i32) {
    %c0_i32 = arith.constant 0 : i32
    %c0_i32_0 = arith.constant 0 : i32
    %c0_i32_1 = arith.constant 0 : i32
    %c0_i32_2 = arith.constant 0 : i32
    return %c0_i32, %c0_i32_0, %c0_i32_1 : i32, i32, i32
  }
  func.func @transform_2(%arg0: i32) -> (i32, i32) {
    %c0_i32 = arith.constant 0 : i32
    %c0_i32_0 = arith.constant 0 : i32
    %c0_i32_1 = arith.constant 0 : i32
    return %c0_i32, %c0_i32_0 : i32, i32
  }
  func.func @transform_3(%arg0: i32) -> (i32, i32) {
    %c0_i32 = arith.constant 0 : i32
    %c0_i32_0 = arith.constant 0 : i32
    %c0_i32_1 = arith.constant 0 : i32
    return %c0_i32, %c0_i32_0 : i32, i32
  }
  func.func @transform_4(%arg0: i32) -> (i32, i32) {
    %c0_i32 = arith.constant 0 : i32
    %c0_i32_0 = arith.constant 0 : i32
    %c0_i32_1 = arith.constant 0 : i32
    return %c0_i32, %c0_i32_0 : i32, i32
  }
  func.func @transform_5(%arg0: i32) -> (i32, i32, i32) {
    %c0_i32 = arith.constant 0 : i32
    %c0_i32_0 = arith.constant 0 : i32
    %c0_i32_1 = arith.constant 0 : i32
    return %arg0, %c0_i32, %c0_i32_0 : i32, i32, i32
  }
}

</mosaic_0001>

<llo_original>
// kernel: tpu_custom_call.1
$region0: #{tpu_custom_call.1}
  #allocation0 [shape = 'u32[]', space=smem, size = 0x4, offset = 0x4, fixed_abs, tag = 'smem constant byte address 0x4 - core index']
  #allocation1 [shape = 'u32[144,128]{1,0:T(1,128)}', space=vmem, size = 0x12000, scoped, tag = 'internal scratch']
  %s0 = inlined_call_operand.hbm [shape: f32[2,8,32], index: 0, kind: input, shape index: {}]
  %s1 = inlined_call_operand.hbm [shape: f32[3,32,32], index: 1, kind: input, shape index: {}]
  %s2 = inlined_call_operand.hbm [shape: f32[32,32], index: 2, kind: input, shape index: {}]
  %s3 = inlined_call_operand.vmem [shape: f32[1,32], index: 3, kind: input, shape index: {}]
  %s4 = inlined_call_operand.hbm [shape: f32[32,32], index: 4, kind: input, shape index: {}]
  %s5 = inlined_call_operand.hbm [shape: f32[2,8,32], index: 5, kind: output, shape index: {}]
  %s6 = sld [smem:[#allocation0]]
  $region69: #{tpu_custom_call.1} parent=0
    _
  %s8 = ssub.s32 1, %s6
  %s9 = scalar_select 0, %s8, %s6
  $region1: #{tpu_custom_call.1} parent=0
    #allocation2 [shape = 'u8[8192]{0}', space=vmem, size = 0x2000, scoped, tag = 'input window, operand 0']
    #allocation3 [shape = 's32[2]{0}', space=sflag, size = 0x8, scoped, tag = 'scoped memory for tpu_custom_call.1']
    #allocation4 [shape = 's32[2]{0}', space=sflag, size = 0x8, scoped, tag = 'scoped memory for tpu_custom_call.1']
    #allocation5 [shape = 'u8[49152]{0}', space=vmem, size = 0xc000, scoped, tag = 'input window, operand 1, single buffered']
    #allocation6 [shape = 's32[1]{0}', space=sflag, size = 0x4, scoped, tag = 'scoped memory for tpu_custom_call.1']
    #allocation7 [shape = 'u8[16384]{0}', space=vmem, size = 0x4000, scoped, tag = 'input window, operand 2, single buffered']
    #allocation8 [shape = 'u8[16384]{0}', space=vmem, size = 0x4000, scoped, tag = 'input window, operand 4, single buffered']
    #allocation9 [shape = 's32[1]{0}', space=sflag, size = 0x4, scoped, tag = 'scoped memory for tpu_custom_call.1']
    #allocation10 [shape = 'u8[8192]{0}', space=vmem, size = 0x2000, scoped, tag = 'output window, operand 0']
    %10 = vsyncpa [#allocation3], 0
    %s11 = scalar_lea.sflag [#allocation3], 1
    %12 = vsyncpa %s11, 0
    %13 = vsyncpa [#allocation6], 0
    %14 = vsyncpa [#allocation9], 0
    %15 = vsyncpa [#allocation4], 0
    %s16 = scalar_lea.sflag [#allocation4], 1
    %17 = vsyncpa %s16, 0
    loop: start=0, step=1, limit=4
    $region2: #{tpu_custom_call.1} parent=1 // loop_pre_header
      _
    $region3: #{tpu_custom_call.1} parent=1 // loop_header
      %s19 = sphi 0, %s23
      %p20 = scmp.ge.s32.totalorder %s19, 4
      %s29 = sphi 0, %s31
      %s32 = sphi 0, %s29
      %s33 = sphi 0, %s32
      %s49 = sphi 0, %s33
      %s53 = sphi 0, %s53
      %s55 = sphi 0, %s53
      %s56 = sphi 0, %s55
      %s70 = sphi 0, %s56
      %s74 = sphi 0, %s74
      %s76 = sphi 0, %s74
      %s77 = sphi 0, %s76
      %s91 = sphi 0, %s77
      %s95 = sphi 0, %s95
      %s97 = sphi 0, %s95
      %s98 = sphi 0, %s97
      %s112 = sphi 0, %s98
      %s116 = sphi 0, %s116
      %s118 = sphi 0, %s116
      %s119 = sphi 0, %s118
      %s133 = sphi 0, %s119
      %s139 = sphi 0, %s141
      %s142 = sphi 0, %s139
      %s143 = sphi 0, %s142
      %s159 = sphi 0, %s143
    $region4: #{tpu_custom_call.1} parent=1 // loop_header_branch
      %22 = sbr.rel (%p20) target = $region8
    $region5: #{tpu_custom_call.1} parent=1 // loop_body
      %s24 = ssub.s32 %s19, 1
      %s25 = ssub.s32 %s19, 2
      %s26 = sadd.s32 %s19, 1
      %s27 = ssub.s32 %s19, %s26
      %p28 = scmp.eq.s32.totalorder %s27, 0
      %s30 = sadd.s32 %s29, 1
      %s31 = scalar_select %p28, %s29, %s30
      %p34 = pneg %p28
      %p35 = scmp.eq.s32.totalorder %s19, 1
      %p36 = por %p34, %p35
      %p37 = scmp.ne.s32.totalorder %s29, %s32
      %p38 = scmp.eq.s32.totalorder %s19, 0
      %p39 = por %p37, %p38
      %p40 = scmp.ne.s32.totalorder %s29, %s32
      %p41 = scmp.eq.s32.totalorder %s24, 1
      %p42 = por %p40, %p41
      %p43 = scmp.ne.s32.totalorder %s32, %s33
      %p44 = scmp.eq.s32.totalorder %s24, 0
      %p45 = por %p43, %p44
      %p46 = scmp.ne.s32.totalorder %s32, %s33
      %p47 = scmp.eq.s32.totalorder %s25, 1
      %p48 = por %p46, %p47
      %p50 = scmp.ne.s32.totalorder %s33, %s49
      %p51 = scmp.eq.s32.totalorder %s25, 0
      %p52 = por %p50, %p51
      %s54 = sadd.s32 %s53, 1
      %p57 = scmp.eq.s32.totalorder %s19, 1
      %p58 = scmp.ne.s32.totalorder %s53, %s55
      %p59 = scmp.eq.s32.totalorder %s19, 0
      %p60 = por %p58, %p59
      %p61 = scmp.ne.s32.totalorder %s53, %s55
      %p62 = scmp.eq.s32.totalorder %s24, 1
      %p63 = por %p61, %p62
      %p64 = scmp.ne.s32.totalorder %s55, %s56
      %p65 = scmp.eq.s32.totalorder %s24, 0
      %p66 = por %p64, %p65
      %p67 = scmp.ne.s32.totalorder %s55, %s56
      %p68 = scmp.eq.s32.totalorder %s25, 1
      %p69 = por %p67, %p68
      %p71 = scmp.ne.s32.totalorder %s56, %s70
      %p72 = scmp.eq.s32.totalorder %s25, 0
      %p73 = por %p71, %p72
      %s75 = sadd.s32 %s74, 1
      %p78 = scmp.eq.s32.totalorder %s19, 1
      %p79 = scmp.ne.s32.totalorder %s74, %s76
      %p80 = scmp.eq.s32.totalorder %s19, 0
      %p81 = por %p79, %p80
      %p82 = scmp.ne.s32.totalorder %s74, %s76
      %p83 = scmp.eq.s32.totalorder %s24, 1
      %p84 = por %p82, %p83
      %p85 = scmp.ne.s32.totalorder %s76, %s77
      %p86 = scmp.eq.s32.totalorder %s24, 0
      %p87 = por %p85, %p86
      %p88 = scmp.ne.s32.totalorder %s76, %s77
      %p89 = scmp.eq.s32.totalorder %s25, 1
      %p90 = por %p88, %p89
      %p92 = scmp.ne.s32.totalorder %s77, %s91
      %p93 = scmp.eq.s32.totalorder %s25, 0
      %p94 = por %p92, %p93
      %s96 = sadd.s32 %s95, 1
      %p99 = scmp.eq.s32.totalorder %s19, 1
      %p100 = scmp.ne.s32.totalorder %s95, %s97
      %p101 = scmp.eq.s32.totalorder %s19, 0
      %p102 = por %p100, %p101
      %p103 = scmp.ne.s32.totalorder %s95, %s97
      %p104 = scmp.eq.s32.totalorder %s24, 1
      %p105 = por %p103, %p104
      %p106 = scmp.ne.s32.totalorder %s97, %s98
      %p107 = scmp.eq.s32.totalorder %s24, 0
      %p108 = por %p106, %p107
      %p109 = scmp.ne.s32.totalorder %s97, %s98
      %p110 = scmp.eq.s32.totalorder %s25, 1
      %p111 = por %p109, %p110
      %p113 = scmp.ne.s32.totalorder %s98, %s112
      %p114 = scmp.eq.s32.totalorder %s25, 0
      %p115 = por %p113, %p114
      %s117 = sadd.s32 %s116, 1
      %p120 = scmp.eq.s32.totalorder %s19, 1
      %p121 = scmp.ne.s32.totalorder %s116, %s118
      %p122 = scmp.eq.s32.totalorder %s19, 0
      %p123 = por %p121, %p122
      %p124 = scmp.ne.s32.totalorder %s116, %s118
      %p125 = scmp.eq.s32.totalorder %s24, 1
      %p126 = por %p124, %p125
      %p127 = scmp.ne.s32.totalorder %s118, %s119
      %p128 = scmp.eq.s32.totalorder %s24, 0
      %p129 = por %p127, %p128
      %p130 = scmp.ne.s32.totalorder %s118, %s119
      %p131 = scmp.eq.s32.totalorder %s25, 1
      %p132 = por %p130, %p131
      %p134 = scmp.ne.s32.totalorder %s119, %s133
      %p135 = scmp.eq.s32.totalorder %s25, 0
      %p136 = por %p134, %p135
      %s137 = ssub.s32 %s19, %s26
      %p138 = scmp.eq.s32.totalorder %s137, 0
      %s140 = sadd.s32 %s139, 1
      %s141 = scalar_select %p138, %s139, %s140
      %p144 = pneg %p138
      %p145 = scmp.eq.s32.totalorder %s19, 1
      %p146 = por %p144, %p145
      %p147 = scmp.ne.s32.totalorder %s139, %s142
      %p148 = scmp.eq.s32.totalorder %s19, 0
      %p149 = por %p147, %p148
      %p150 = scmp.ne.s32.totalorder %s139, %s142
      %p151 = scmp.eq.s32.totalorder %s24, 1
      %p152 = por %p150, %p151
      %p153 = scmp.ne.s32.totalorder %s142, %s143
      %p154 = scmp.eq.s32.totalorder %s24, 0
      %p155 = por %p153, %p154
      %p156 = scmp.ne.s32.totalorder %s142, %s143
      %p157 = scmp.eq.s32.totalorder %s25, 1
      %p158 = por %p156, %p157
      %p160 = scmp.ne.s32.totalorder %s143, %s159
      %p161 = scmp.eq.s32.totalorder %s25, 0
      %p162 = por %p160, %p161
      %p163 = scmp.le.s32.totalorder 1, %s19
      %p164 = scmp.lt.s32.totalorder %s19, 3
      %p165 = pnand %p163, %p164
      %p166 = pneg %p165
      // Predicated region
      $region9: #{tpu_custom_call.1} parent=5 // pred_check
        _
      $region10: #{tpu_custom_call.1} parent=5 // pred_check_branch
        %168 = sbr.rel (%p165) target = $region12
      $region11: #{tpu_custom_call.1} parent=5 // pred_region
        %s169 = ssub.s32 %s19, 1
        // Predicated region
        $region13: #{tpu_custom_call.1} parent=11 // pred_check
          %p170 = pneg %p66
        $region14: #{tpu_custom_call.1} parent=11 // pred_check_branch
          %172 = sbr.rel (%p170) target = $region16
        $region15: #{tpu_custom_call.1} parent=11 // pred_region
          %s174 = ssub.s32 1536, 1536
          %175 = vsyncadd [#allocation6], %s174
          %s176 = sshll.u32 [#allocation5], 4
          %s177 = int_to_ptr.vmem [resolvable:$true] %s176
          %182 = dma.hbm_to_vmem [thread:$0]  %s1, 1536, %s177, [#allocation6], 128, 128, 8
        $region16: #{tpu_custom_call.1} parent=11 // pred_fallthru
          _
        // Predicated region
        $region17: #{tpu_custom_call.1} parent=11 // pred_check
          %p183 = pneg %p87
        $region18: #{tpu_custom_call.1} parent=11 // pred_check_branch
          %185 = sbr.rel (%p183) target = $region20
        $region19: #{tpu_custom_call.1} parent=11 // pred_region
          %s187 = ssub.s32 512, 512
          %188 = vsyncadd [#allocation6], %s187
          %s189 = sshll.u32 [#allocation7], 4
          %s190 = int_to_ptr.vmem [resolvable:$true] %s189
          %195 = dma.hbm_to_vmem [thread:$0]  %s2, 512, %s190, [#allocation6], 128, 128, 8
        $region20: #{tpu_custom_call.1} parent=11 // pred_fallthru
          _
        // Predicated region
        $region21: #{tpu_custom_call.1} parent=11 // pred_check
          %p196 = pneg %p108
        $region22: #{tpu_custom_call.1} parent=11 // pred_check_branch
          %198 = sbr.rel (%p196) target = $region24
        $region23: #{tpu_custom_call.1} parent=11 // pred_region
          _
        $region24: #{tpu_custom_call.1} parent=11 // pred_fallthru
          _
        // Predicated region
        $region25: #{tpu_custom_call.1} parent=11 // pred_check
          %p199 = pneg %p129
        $region26: #{tpu_custom_call.1} parent=11 // pred_check_branch
          %201 = sbr.rel (%p199) target = $region28
        $region27: #{tpu_custom_call.1} parent=11 // pred_region
          %s203 = ssub.s32 512, 512
          %204 = vsyncadd [#allocation9], %s203
          %s205 = sshll.u32 [#allocation8], 4
          %s206 = int_to_ptr.vmem [resolvable:$true] %s205
          %211 = dma.hbm_to_vmem [thread:$0]  %s4, 512, %s206, [#allocation9], 128, 128, 8
        $region28: #{tpu_custom_call.1} parent=11 // pred_fallthru
          _
      $region12: #{tpu_custom_call.1} parent=5 // pred_fallthru
        _
      %p212 = scmp.lt.s32.totalorder %s19, 2
      // Predicated region
      $region29: #{tpu_custom_call.1} parent=5 // pred_check
        %p213 = pneg %p212
      $region30: #{tpu_custom_call.1} parent=5 // pred_check_branch
        %215 = sbr.rel (%p213) target = $region32
      $region31: #{tpu_custom_call.1} parent=5 // pred_region
        // Predicated region
        $region33: #{tpu_custom_call.1} parent=31 // pred_check
          %p216 = pneg %p39
        $region34: #{tpu_custom_call.1} parent=31 // pred_check_branch
          %218 = sbr.rel (%p216) target = $region36
        $region35: #{tpu_custom_call.1} parent=31 // pred_region
          %s219 = sand.u32 %s29, 1
          %s220 = scalar_lea.sflag [#allocation3], %s219
          %s221 = sand.u32 %s29, 1
          %s222 = smul.addr %s221, 8
          %s223 = scalar_lea.vmem [#allocation2], %s222
          %s225 = ssub.s32 128, 128
          %226 = vsyncadd %s220, %s225
          %s227 = smul.addr %s19, 128
          %s228 = scalar_lea.hbm %s0, %s227
          %s230 = sshll.u32 %s223, 4
          %s231 = int_to_ptr.vmem [resolvable:$true] %s230
          %233 = dma.hbm_to_vmem [thread:$0]  %s228, 128, %s231, %s220
        $region36: #{tpu_custom_call.1} parent=31 // pred_fallthru
          _
      $region32: #{tpu_custom_call.1} parent=5 // pred_fallthru
        _
      %p234 = scmp.le.s32.totalorder 1, %s19
      %p235 = scmp.lt.s32.totalorder %s19, 3
      %p236 = pnand %p234, %p235
      %p237 = pneg %p236
      // Predicated region
      $region37: #{tpu_custom_call.1} parent=5 // pred_check
        _
      $region38: #{tpu_custom_call.1} parent=5 // pred_check_branch
        %239 = sbr.rel (%p236) target = $region40
      $region39: #{tpu_custom_call.1} parent=5 // pred_region
        %s240 = ssub.s32 %s19, 1
        %s241 = sand.u32 %s32, 1
        %s242 = scalar_lea.sflag [#allocation3], %s241
        %s243 = sand.u32 %s32, 1
        %s244 = smul.addr %s243, 8
        %s245 = scalar_lea.vmem [#allocation2], %s244
        // Predicated region
        $region41: #{tpu_custom_call.1} parent=39 // pred_check
          %p246 = pneg %p45
        $region42: #{tpu_custom_call.1} parent=39 // pred_check_branch
          %248 = sbr.rel (%p246) target = $region44
        $region43: #{tpu_custom_call.1} parent=39 // pred_region
          %249 = dma.done %s242, 128
        $region44: #{tpu_custom_call.1} parent=39 // pred_fallthru
          _
        // Predicated region
        $region45: #{tpu_custom_call.1} parent=39 // pred_check
          %p250 = pneg %p66
        $region46: #{tpu_custom_call.1} parent=39 // pred_check_branch
          %252 = sbr.rel (%p250) target = $region48
        $region47: #{tpu_custom_call.1} parent=39 // pred_region
          %253 = dma.done [#allocation6], 1536
        $region48: #{tpu_custom_call.1} parent=39 // pred_fallthru
          _
        // Predicated region
        $region49: #{tpu_custom_call.1} parent=39 // pred_check
          %p254 = pneg %p87
        $region50: #{tpu_custom_call.1} parent=39 // pred_check_branch
          %256 = sbr.rel (%p254) target = $region52
        $region51: #{tpu_custom_call.1} parent=39 // pred_region
          %257 = dma.done [#allocation6], 512
        $region52: #{tpu_custom_call.1} parent=39 // pred_fallthru
          _
        // Predicated region
        $region53: #{tpu_custom_call.1} parent=39 // pred_check
          %p258 = pneg %p129
        $region54: #{tpu_custom_call.1} parent=39 // pred_check_branch
          %260 = sbr.rel (%p258) target = $region56
        $region55: #{tpu_custom_call.1} parent=39 // pred_region
          %261 = dma.done [#allocation9], 512
        $region56: #{tpu_custom_call.1} parent=39 // pred_fallthru
          _
        %s262 = sand.u32 %s32, 1
        %s263 = scalar_lea.sflag [#allocation3], %s262
        %s264 = sand.u32 %s32, 1
        %s265 = smul.addr %s264, 8
        %s266 = scalar_lea.vmem [#allocation2], %s265
        %p267 = pneg %p45
        %p268 = pneg %p42
        %p269 = pneg %p66
        %p270 = pneg %p63
        %p271 = pneg %p87
        %p272 = pneg %p84
        %p273 = pneg %p108
        %p274 = pneg %p105
        %p275 = pneg %p129
        %p276 = pneg %p126
        %p277 = pneg %p155
        %p278 = pneg %p152
        %s279 = sand.u32 %s142, 1
        %s280 = scalar_lea.sflag [#allocation4], %s279
        %s281 = sand.u32 %s142, 1
        %s282 = smul.addr %s281, 8
        %s283 = scalar_lea.vmem [#allocation10], %s282
        %v284 = vld [vmem:[%s245] sm:$0xff]
        %v285 = vld [vmem:[#allocation5] sm:$0xff]
        %v286 = vld [vmem:[#allocation5 + $0x8] sm:$0xff]
        %v287 = vld [vmem:[#allocation5 + $0x10] sm:$0xff]
        %v288 = vld [vmem:[#allocation5 + $0x18] sm:$0xff]
        %vm289 = vcmask 261120
        %v291 = vsel %vm289, %v284, 0
        %293 = vmatprep.subr.mxu0 0.0
        %294 = vmatpush1.msra.mxu0 %v285
        %295 = vmatprep.subr.mxu0 0.0
        %296 = vmatpush1.msra.mxu0 %v286
        %297 = vmatprep.subr.mxu0 0.0
        %298 = vmatpush1.msra.mxu0 %v287
        %299 = vmatprep.subr.mxu0 0.0
        %300 = vmatpush1.msra.mxu0 %v288
        %301 = vmatprep.subr.mxu0 0.0
        %302 = vmatpush1.msra.mxu0 0.0
        %303 = vmatprep.subr.mxu0 0.0
        %304 = vmatpush1.msra.mxu0 0.0
        %305 = vmatprep.subr.mxu0 0.0
        %306 = vmatpush1.msra.mxu0 0.0
        %307 = vmatprep.subr.mxu0 0.0
        %308 = vmatpush1.msra.mxu0 0.0
        %309 = vmatprep.subr.mxu0 0.0
        %310 = vmatpush1.msra.mxu0 0.0
        %311 = vmatprep.subr.mxu0 0.0
        %312 = vmatpush1.msra.mxu0 0.0
        %313 = vmatprep.subr.mxu0 0.0
        %314 = vmatpush1.msra.mxu0 0.0
        %315 = vmatprep.subr.mxu0 0.0
        %316 = vmatpush1.msra.mxu0 0.0
        %317 = vmatprep.subr.mxu0 0.0
        %318 = vmatpush1.msra.mxu0 0.0
        %319 = vmatprep.subr.mxu0 0.0
        %320 = vmatpush1.msra.mxu0 0.0
        %321 = vmatprep.subr.mxu0 0.0
        %322 = vmatpush1.msra.mxu0 0.0
        %323 = vmatprep.subr.mxu0 0.0
        %324 = vmatpush1.msra.mxu0 0.0
        %325 = vmatprep.subr.mxu0 0.0
        %326 = vmatpush1.msra.mxu0 0.0
        %327 = vmatprep.subr.mxu0 0.0
        %328 = vmatpush1.msra.mxu0 0.0
        %329 = vmatprep.subr.mxu0 0.0
        %330 = vmatpush1.msra.mxu0 0.0
        %331 = vmatprep.subr.mxu0 0.0
        %332 = vmatpush1.msra.mxu0 0.0
        %333 = vmatprep.subr.mxu0 0.0
        %334 = vmatpush1.msra.mxu0 0.0
        %335 = vmatprep.subr.mxu0 0.0
        %336 = vmatpush1.msra.mxu0 0.0
        %337 = vmatprep.subr.mxu0 0.0
        %338 = vmatpush1.msra.mxu0 0.0
        %339 = vmatprep.subr.mxu0 0.0
        %340 = vmatpush1.msra.mxu0 0.0
        %341 = vmatprep.subr.mxu0 0.0
        %342 = vmatpush1.msra.mxu0 0.0
        %343 = vmatprep.subr.mxu0 0.0
        %344 = vmatpush1.msra.mxu0 0.0
        %345 = vmatprep.subr.mxu0 0.0
        %346 = vmatpush1.msra.mxu0 0.0
        %347 = vmatprep.subr.mxu0 0.0
        %348 = vmatpush1.msra.mxu0 0.0
        %349 = vmatprep.subr.mxu0 0.0
        %350 = vmatpush1.msra.mxu0 0.0
        %351 = vmatprep.subr.mxu0 0.0
        %352 = vmatpush1.msra.mxu0 0.0
        %353 = vmatprep.subr.mxu0 0.0
        %354 = vmatpush1.msra.mxu0 0.0
        %355 = vmatprep.subr.mxu0 0.0
        %356 = vmatpush1.msra.mxu0 0.0
        %357 = vmatprep.mubr.f32.mxu0 0.0
        %358 = vmatmul.mubr.f32.gmra.mrb[0].mxu0 %v291
        %v359 = vpop.f32.mrb[0].mxu0
        %v360 = vadd.f32 0.0, %v359
        %v361 = vpop.f32.mrb[0].mxu0
        %362 = vdwg.mxu0
        %s363 = scalar_lea.vmem [#allocation5], 32
        %v364 = vld [vmem:[%s363] sm:$0xff]
        %v365 = vld [vmem:[%s363 + $0x8] sm:$0xff]
        %v366 = vld [vmem:[%s363 + $0x10] sm:$0xff]
        %v367 = vld [vmem:[%s363 + $0x18] sm:$0xff]
        %368 = vmatprep.subr.mxu0 0.0
        %369 = vmatpush1.msra.mxu0 %v364
        %370 = vmatprep.subr.mxu0 0.0
        %371 = vmatpush1.msra.mxu0 %v365
        %372 = vmatprep.subr.mxu0 0.0
        %373 = vmatpush1.msra.mxu0 %v366
        %374 = vmatprep.subr.mxu0 0.0
        %375 = vmatpush1.msra.mxu0 %v367
        %376 = vmatprep.subr.mxu0 0.0
        %377 = vmatpush1.msra.mxu0 0.0
        %378 = vmatprep.subr.mxu0 0.0
        %379 = vmatpush1.msra.mxu0 0.0
        %380 = vmatprep.subr.mxu0 0.0
        %381 = vmatpush1.msra.mxu0 0.0
        %382 = vmatprep.subr.mxu0 0.0
        %383 = vmatpush1.msra.mxu0 0.0
        %384 = vmatprep.subr.mxu0 0.0
        %385 = vmatpush1.msra.mxu0 0.0
        %386 = vmatprep.subr.mxu0 0.0
        %387 = vmatpush1.msra.mxu0 0.0
        %388 = vmatprep.subr.mxu0 0.0
        %389 = vmatpush1.msra.mxu0 0.0
        %390 = vmatprep.subr.mxu0 0.0
        %391 = vmatpush1.msra.mxu0 0.0
        %392 = vmatprep.subr.mxu0 0.0
        %393 = vmatpush1.msra.mxu0 0.0
        %394 = vmatprep.subr.mxu0 0.0
        %395 = vmatpush1.msra.mxu0 0.0
        %396 = vmatprep.subr.mxu0 0.0
        %397 = vmatpush1.msra.mxu0 0.0
        %398 = vmatprep.subr.mxu0 0.0
        %399 = vmatpush1.msra.mxu0 0.0
        %400 = vmatprep.subr.mxu0 0.0
        %401 = vmatpush1.msra.mxu0 0.0
        %402 = vmatprep.subr.mxu0 0.0
        %403 = vmatpush1.msra.mxu0 0.0
        %404 = vmatprep.subr.mxu0 0.0
        %405 = vmatpush1.msra.mxu0 0.0
        %406 = vmatprep.subr.mxu0 0.0
        %407 = vmatpush1.msra.mxu0 0.0
        %408 = vmatprep.subr.mxu0 0.0
        %409 = vmatpush1.msra.mxu0 0.0
        %410 = vmatprep.subr.mxu0 0.0
        %411 = vmatpush1.msra.mxu0 0.0
        %412 = vmatprep.subr.mxu0 0.0
        %413 = vmatpush1.msra.mxu0 0.0
        %414 = vmatprep.subr.mxu0 0.0
        %415 = vmatpush1.msra.mxu0 0.0
        %416 = vmatprep.subr.mxu0 0.0
        %417 = vmatpush1.msra.mxu0 0.0
        %418 = vmatprep.subr.mxu0 0.0
        %419 = vmatpush1.msra.mxu0 0.0
        %420 = vmatprep.subr.mxu0 0.0
        %421 = vmatpush1.msra.mxu0 0.0
        %422 = vmatprep.subr.mxu0 0.0
        %423 = vmatpush1.msra.mxu0 0.0
        %424 = vmatprep.subr.mxu0 0.0
        %425 = vmatpush1.msra.mxu0 0.0
        %426 = vmatprep.subr.mxu0 0.0
        %427 = vmatpush1.msra.mxu0 0.0
        %428 = vmatprep.subr.mxu0 0.0
        %429 = vmatpush1.msra.mxu0 0.0
        %430 = vmatprep.subr.mxu0 0.0
        %431 = vmatpush1.msra.mxu0 0.0
        %432 = vmatprep.mubr.f32.mxu0 0.0
        %433 = vmatmul.mubr.f32.gmra.mrb[0].mxu0 %v291
        %v434 = vpop.f32.mrb[0].mxu0
        %v435 = vadd.f32 0.0, %v434
        %v436 = vpop.f32.mrb[0].mxu0
        %437 = vdwg.mxu0
        %s438 = scalar_lea.vmem [#allocation5], 64
        %v439 = vld [vmem:[%s438] sm:$0xff]
        %v440 = vld [vmem:[%s438 + $0x8] sm:$0xff]
        %v441 = vld [vmem:[%s438 + $0x10] sm:$0xff]
        %v442 = vld [vmem:[%s438 + $0x18] sm:$0xff]
        %443 = vmatprep.subr.mxu0 0.0
        %444 = vmatpush1.msra.mxu0 %v439
        %445 = vmatprep.subr.mxu0 0.0
        %446 = vmatpush1.msra.mxu0 %v440
        %447 = vmatprep.subr.mxu0 0.0
        %448 = vmatpush1.msra.mxu0 %v441
        %449 = vmatprep.subr.mxu0 0.0
        %450 = vmatpush1.msra.mxu0 %v442
        %451 = vmatprep.subr.mxu0 0.0
        %452 = vmatpush1.msra.mxu0 0.0
        %453 = vmatprep.subr.mxu0 0.0
        %454 = vmatpush1.msra.mxu0 0.0
        %455 = vmatprep.subr.mxu0 0.0
        %456 = vmatpush1.msra.mxu0 0.0
        %457 = vmatprep.subr.mxu0 0.0
        %458 = vmatpush1.msra.mxu0 0.0
        %459 = vmatprep.subr.mxu0 0.0
        %460 = vmatpush1.msra.mxu0 0.0
        %461 = vmatprep.subr.mxu0 0.0
        %462 = vmatpush1.msra.mxu0 0.0
        %463 = vmatprep.subr.mxu0 0.0
        %464 = vmatpush1.msra.mxu0 0.0
        %465 = vmatprep.subr.mxu0 0.0
        %466 = vmatpush1.msra.mxu0 0.0
        %467 = vmatprep.subr.mxu0 0.0
        %468 = vmatpush1.msra.mxu0 0.0
        %469 = vmatprep.subr.mxu0 0.0
        %470 = vmatpush1.msra.mxu0 0.0
        %471 = vmatprep.subr.mxu0 0.0
        %472 = vmatpush1.msra.mxu0 0.0
        %473 = vmatprep.subr.mxu0 0.0
        %474 = vmatpush1.msra.mxu0 0.0
        %475 = vmatprep.subr.mxu0 0.0
        %476 = vmatpush1.msra.mxu0 0.0
        %477 = vmatprep.subr.mxu0 0.0
        %478 = vmatpush1.msra.mxu0 0.0
        %479 = vmatprep.subr.mxu0 0.0
        %480 = vmatpush1.msra.mxu0 0.0
        %481 = vmatprep.subr.mxu0 0.0
        %482 = vmatpush1.msra.mxu0 0.0
        %483 = vmatprep.subr.mxu0 0.0
        %484 = vmatpush1.msra.mxu0 0.0
        %485 = vmatprep.subr.mxu0 0.0
        %486 = vmatpush1.msra.mxu0 0.0
        %487 = vmatprep.subr.mxu0 0.0
        %488 = vmatpush1.msra.mxu0 0.0
        %489 = vmatprep.subr.mxu0 0.0
        %490 = vmatpush1.msra.mxu0 0.0
        %491 = vmatprep.subr.mxu0 0.0
        %492 = vmatpush1.msra.mxu0 0.0
        %493 = vmatprep.subr.mxu0 0.0
        %494 = vmatpush1.msra.mxu0 0.0
        %495 = vmatprep.subr.mxu0 0.0
        %496 = vmatpush1.msra.mxu0 0.0
        %497 = vmatprep.subr.mxu0 0.0
        %498 = vmatpush1.msra.mxu0 0.0
        %499 = vmatprep.subr.mxu0 0.0
        %500 = vmatpush1.msra.mxu0 0.0
        %501 = vmatprep.subr.mxu0 0.0
        %502 = vmatpush1.msra.mxu0 0.0
        %503 = vmatprep.subr.mxu0 0.0
        %504 = vmatpush1.msra.mxu0 0.0
        %505 = vmatprep.subr.mxu0 0.0
        %506 = vmatpush1.msra.mxu0 0.0
        %507 = vmatprep.mubr.f32.mxu0 0.0
        %508 = vmatmul.mubr.f32.gmra.mrb[0].mxu0 %v291
        %v509 = vpop.f32.mrb[0].mxu0
        %v510 = vadd.f32 0.0, %v509
        %v511 = vpop.f32.mrb[0].mxu0
        %512 = vdwg.mxu0
        %v513 = vld [vmem:[#allocation8] sm:$0xff]
        %v514 = vld [vmem:[#allocation8 + $0x8] sm:$0xff]
        %v515 = vld [vmem:[#allocation8 + $0x10] sm:$0xff]
        %v516 = vld [vmem:[#allocation8 + $0x18] sm:$0xff]
        %517 = vxpose.xlu0.b32.start [1/16] %v435, 128
        %518 = vxpose.xlu0.b32.cont [2/16] 0.0, 128
        %519 = vxpose.xlu0.b32.cont [3/16] 0.0, 128
        %520 = vxpose.xlu0.b32.cont [4/16] 0.0, 128
        %521 = vxpose.xlu0.b32.cont [5/16] 0.0, 128
        %522 = vxpose.xlu0.b32.cont [6/16] 0.0, 128
        %523 = vxpose.xlu0.b32.cont [7/16] 0.0, 128
        %524 = vxpose.xlu0.b32.cont [8/16] 0.0, 128
        %525 = vxpose.xlu0.b32.cont [9/16] 0.0, 128
        %526 = vxpose.xlu0.b32.cont [10/16] 0.0, 128
        %527 = vxpose.xlu0.b32.cont [11/16] 0.0, 128
        %528 = vxpose.xlu0.b32.cont [12/16] 0.0, 128
        %529 = vxpose.xlu0.b32.cont [13/16] 0.0, 128
        %530 = vxpose.xlu0.b32.cont [14/16] 0.0, 128
        %531 = vxpose.xlu0.b32.cont [15/16] 0.0, 128
        %532 = vxpose.xlu0.b32.end [16/16] 0.0, 128
        %v533 = vpop.trf.xlu0
        %v534 = vpop.trf.xlu0
        %v535 = vpop.trf.xlu0
        %v536 = vpop.trf.xlu0
        %v537 = vpop.trf.xlu0
        %v538 = vpop.trf.xlu0
        %v539 = vpop.trf.xlu0
        %v540 = vpop.trf.xlu0
        %v541 = vpop.trf.xlu0
        %v542 = vpop.trf.xlu0
        %v543 = vpop.trf.xlu0
        %v544 = vpop.trf.xlu0
        %v545 = vpop.trf.xlu0
        %v546 = vpop.trf.xlu0
        %v547 = vpop.trf.xlu0
        %v548 = vpop.trf.xlu0
        %vm549 = vcmask 64512
        %v551 = vsel %vm549, %v533, 0
        %v554 = vsel %vm549, %v534, 0
        %v557 = vsel %vm549, %v535, 0
        %v560 = vsel %vm549, %v536, 0
        %562 = vmatprep.subr.mxu0 0.0
        %563 = vmatpush1.msra.mxu0 %v510
        %564 = vmatprep.subr.mxu0 0.0
        %565 = vmatpush1.msra.mxu0 0.0
        %566 = vmatprep.subr.mxu0 0.0
        %567 = vmatpush1.msra.mxu0 0.0
        %568 = vmatprep.subr.mxu0 0.0
        %569 = vmatpush1.msra.mxu0 0.0
        %570 = vmatprep.subr.mxu0 0.0
        %571 = vmatpush1.msra.mxu0 0.0
        %572 = vmatprep.subr.mxu0 0.0
        %573 = vmatpush1.msra.mxu0 0.0
        %574 = vmatprep.subr.mxu0 0.0
        %575 = vmatpush1.msra.mxu0 0.0
        %576 = vmatprep.subr.mxu0 0.0
        %577 = vmatpush1.msra.mxu0 0.0
        %578 = vmatprep.subr.mxu0 0.0
        %579 = vmatpush1.msra.mxu0 0.0
        %580 = vmatprep.subr.mxu0 0.0
        %581 = vmatpush1.msra.mxu0 0.0
        %582 = vmatprep.subr.mxu0 0.0
        %583 = vmatpush1.msra.mxu0 0.0
        %584 = vmatprep.subr.mxu0 0.0
        %585 = vmatpush1.msra.mxu0 0.0
        %586 = vmatprep.subr.mxu0 0.0
        %587 = vmatpush1.msra.mxu0 0.0
        %588 = vmatprep.subr.mxu0 0.0
        %589 = vmatpush1.msra.mxu0 0.0
        %590 = vmatprep.subr.mxu0 0.0
        %591 = vmatpush1.msra.mxu0 0.0
        %592 = vmatprep.subr.mxu0 0.0
        %593 = vmatpush1.msra.mxu0 0.0
        %594 = vmatprep.subr.mxu0 0.0
        %595 = vmatpush1.msra.mxu0 0.0
        %596 = vmatprep.subr.mxu0 0.0
        %597 = vmatpush1.msra.mxu0 0.0
        %598 = vmatprep.subr.mxu0 0.0
        %599 = vmatpush1.msra.mxu0 0.0
        %600 = vmatprep.subr.mxu0 0.0
        %601 = vmatpush1.msra.mxu0 0.0
        %602 = vmatprep.subr.mxu0 0.0
        %603 = vmatpush1.msra.mxu0 0.0
        %604 = vmatprep.subr.mxu0 0.0
        %605 = vmatpush1.msra.mxu0 0.0
        %606 = vmatprep.subr.mxu0 0.0
        %607 = vmatpush1.msra.mxu0 0.0
        %608 = vmatprep.subr.mxu0 0.0
        %609 = vmatpush1.msra.mxu0 0.0
        %610 = vmatprep.subr.mxu0 0.0
        %611 = vmatpush1.msra.mxu0 0.0
        %612 = vmatprep.subr.mxu0 0.0
        %613 = vmatpush1.msra.mxu0 0.0
        %614 = vmatprep.subr.mxu0 0.0
        %615 = vmatpush1.msra.mxu0 0.0
        %616 = vmatprep.subr.mxu0 0.0
        %617 = vmatpush1.msra.mxu0 0.0
        %618 = vmatprep.subr.mxu0 0.0
        %619 = vmatpush1.msra.mxu0 0.0
        %620 = vmatprep.subr.mxu0 0.0
        %621 = vmatpush1.msra.mxu0 0.0
        %622 = vmatprep.subr.mxu0 0.0
        %623 = vmatpush1.msra.mxu0 0.0
        %624 = vmatprep.subr.mxu0 0.0
        %625 = vmatpush1.msra.mxu0 0.0
        %626 = vmatprep.mubr.f32.mxu0 0.0
        %627 = vmatmul.mubr.f32.gmra.mrb[0].mxu0 %v551
        %v628 = vpop.f32.mrb[0].mxu0
        %v629 = vadd.f32 %v513, %v628
        %v630 = vpop.f32.mrb[0].mxu0
        %631 = vmatprep.mubr.f32.mxu0 0.0
        %632 = vmatmul.mubr.f32.gmra.mrb[0].mxu0 %v554
        %v633 = vpop.f32.mrb[0].mxu0
        %v634 = vadd.f32 %v514, %v633
        %v635 = vpop.f32.mrb[0].mxu0
        %636 = vmatprep.mubr.f32.mxu0 0.0
        %637 = vmatmul.mubr.f32.gmra.mrb[0].mxu0 %v557
        %v638 = vpop.f32.mrb[0].mxu0
        %v639 = vadd.f32 %v515, %v638
        %v640 = vpop.f32.mrb[0].mxu0
        %641 = vmatprep.mubr.f32.mxu0 0.0
        %642 = vmatmul.mubr.f32.gmra.mrb[0].mxu0 %v560
        %v643 = vpop.f32.mrb[0].mxu0
        %v644 = vadd.f32 %v516, %v643
        %v645 = vpop.f32.mrb[0].mxu0
        %646 = vdwg.mxu0
        %v647 = vsel %vm289, %v629, -inf
        %648 = vmax.xlane.f32.xlu0 %v647
        %v649 = vpop.xlane.xlu0 %648
        %v650 = vsel %vm289, %v634, -inf
        %651 = vmax.xlane.f32.xlu0 %v650
        %v652 = vpop.xlane.xlu0 %651
        %v653 = vsel %vm289, %v639, -inf
        %654 = vmax.xlane.f32.xlu0 %v653
        %v655 = vpop.xlane.xlu0 %654
        %v656 = vsel %vm289, %v644, -inf
        %657 = vmax.xlane.f32.xlu0 %v656
        %v658 = vpop.xlane.xlu0 %657
        %v659 = vsub.f32 %v629, %v649
        %v660 = vsub.f32 %v634, %v652
        %v661 = vsub.f32 %v639, %v655
        %v662 = vsub.f32 %v644, %v658
        %v663 = vmul.f32 %v659, 1.442695
        %v664 = vpow.pop %v663
        %v665 = vmul.f32 %v660, 1.442695
        %v666 = vpow.pop %v665
        %v667 = vmul.f32 %v661, 1.442695
        %v668 = vpow.pop %v667
        %v669 = vmul.f32 %v662, 1.442695
        %v670 = vpow.pop %v669
        %v671 = vsel %vm289, %v664, 0.0
        %672 = vadd.xlane.f32.xlu0 %v671
        %v673 = vpop.xlane.xlu0 %672
        %v674 = vsel %vm289, %v666, 0.0
        %675 = vadd.xlane.f32.xlu0 %v674
        %v676 = vpop.xlane.xlu0 %675
        %v677 = vsel %vm289, %v668, 0.0
        %678 = vadd.xlane.f32.xlu0 %v677
        %v679 = vpop.xlane.xlu0 %678
        %v680 = vsel %vm289, %v670, 0.0
        %681 = vadd.xlane.f32.xlu0 %v680
        %v682 = vpop.xlane.xlu0 %681
        %v683 = vrcp.pop %v673
        %v684 = vrcp.pop %v676
        %v685 = vrcp.pop %v679
        %v686 = vrcp.pop %v682
        %v687 = vmul.f32 %v664, %v683
        %v688 = vmul.f32 %v666, %v684
        %v689 = vmul.f32 %v668, %v685
        %v690 = vmul.f32 %v670, %v686
        %v692 = vsel %vm289, %v360, 0
        %v695 = vsel %vm289, %v687, 0
        %v698 = vsel %vm289, %v688, 0
        %v701 = vsel %vm289, %v689, 0
        %v704 = vsel %vm289, %v690, 0
        %706 = vmatprep.subr.mxu0 0.0
        %707 = vmatpush1.xpose.msra.mxu0 %v695
        %708 = vmatprep.subr.mxu0 0.0
        %709 = vmatpush1.xpose.msra.mxu0 %v698
        %710 = vmatprep.subr.mxu0 0.0
        %711 = vmatpush1.xpose.msra.mxu0 %v701
        %712 = vmatprep.subr.mxu0 0.0
        %713 = vmatpush1.xpose.msra.mxu0 %v704
        %714 = vmatprep.subr.mxu0 0.0
        %715 = vmatpush1.xpose.msra.mxu0 0.0
        %716 = vmatprep.subr.mxu0 0.0
        %717 = vmatpush1.xpose.msra.mxu0 0.0
        %718 = vmatprep.subr.mxu0 0.0
        %719 = vmatpush1.xpose.msra.mxu0 0.0
        %720 = vmatprep.subr.mxu0 0.0
        %721 = vmatpush1.xpose.msra.mxu0 0.0
        %722 = vmatprep.subr.mxu0 0.0
        %723 = vmatpush1.xpose.msra.mxu0 0.0
        %724 = vmatprep.subr.mxu0 0.0
        %725 = vmatpush1.xpose.msra.mxu0 0.0
        %726 = vmatprep.subr.mxu0 0.0
        %727 = vmatpush1.xpose.msra.mxu0 0.0
        %728 = vmatprep.subr.mxu0 0.0
        %729 = vmatpush1.xpose.msra.mxu0 0.0
        %730 = vmatprep.subr.mxu0 0.0
        %731 = vmatpush1.xpose.msra.mxu0 0.0
        %732 = vmatprep.subr.mxu0 0.0
        %733 = vmatpush1.xpose.msra.mxu0 0.0
        %734 = vmatprep.subr.mxu0 0.0
        %735 = vmatpush1.xpose.msra.mxu0 0.0
        %736 = vmatprep.subr.mxu0 0.0
        %737 = vmatpush1.xpose.msra.mxu0 0.0
        %738 = vmatprep.subr.mxu0 0.0
        %739 = vmatpush1.xpose.msra.mxu0 0.0
        %740 = vmatprep.subr.mxu0 0.0
        %741 = vmatpush1.xpose.msra.mxu0 0.0
        %742 = vmatprep.subr.mxu0 0.0
        %743 = vmatpush1.xpose.msra.mxu0 0.0
        %744 = vmatprep.subr.mxu0 0.0
        %745 = vmatpush1.xpose.msra.mxu0 0.0
        %746 = vmatprep.subr.mxu0 0.0
        %747 = vmatpush1.xpose.msra.mxu0 0.0
        %748 = vmatprep.subr.mxu0 0.0
        %749 = vmatpush1.xpose.msra.mxu0 0.0
        %750 = vmatprep.subr.mxu0 0.0
        %751 = vmatpush1.xpose.msra.mxu0 0.0
        %752 = vmatprep.subr.mxu0 0.0
        %753 = vmatpush1.xpose.msra.mxu0 0.0
        %754 = vmatprep.subr.mxu0 0.0
        %755 = vmatpush1.xpose.msra.mxu0 0.0
        %756 = vmatprep.subr.mxu0 0.0
        %757 = vmatpush1.xpose.msra.mxu0 0.0
        %758 = vmatprep.subr.mxu0 0.0
        %759 = vmatpush1.xpose.msra.mxu0 0.0
        %760 = vmatprep.subr.mxu0 0.0
        %761 = vmatpush1.xpose.msra.mxu0 0.0
        %762 = vmatprep.subr.mxu0 0.0
        %763 = vmatpush1.xpose.msra.mxu0 0.0
        %764 = vmatprep.subr.mxu0 0.0
        %765 = vmatpush1.xpose.msra.mxu0 0.0
        %766 = vmatprep.subr.mxu0 0.0
        %767 = vmatpush1.xpose.msra.mxu0 0.0
        %768 = vmatprep.subr.mxu0 0.0
        %769 = vmatpush1.xpose.msra.mxu0 0.0
        %770 = vmatprep.mubr.f32.mxu0 0.0
        %771 = vmatmul.mubr.f32.gmra.mrb[0].mxu0 %v692
        %v772 = vpop.f32.mrb[0].mxu0
        %v773 = vadd.f32 0.0, %v772
        %v774 = vpop.f32.mrb[0].mxu0
        %775 = vdwg.mxu0
        %v776 = vld [vmem:[#allocation7] sm:$0xff]
        %v777 = vld [vmem:[#allocation7 + $0x8] sm:$0xff]
        %v778 = vld [vmem:[#allocation7 + $0x10] sm:$0xff]
        %v779 = vld [vmem:[#allocation7 + $0x18] sm:$0xff]
        %v780 = vld [vmem:[%s3] sm:$0x1]
        %v782 = vlaneseq
        %v783 = vshrl.u32 %v782, 7
        %v784 = vsub.s32 0, %v783
        %v785 = vrot.slane %v780, %v784
        %v788 = vsel %vm289, %v773, 0
        %790 = vmatprep.subr.mxu0 0.0
        %791 = vmatpush1.msra.mxu0 %v776
        %792 = vmatprep.subr.mxu0 0.0
        %793 = vmatpush1.msra.mxu0 %v777
        %794 = vmatprep.subr.mxu0 0.0
        %795 = vmatpush1.msra.mxu0 %v778
        %796 = vmatprep.subr.mxu0 0.0
        %797 = vmatpush1.msra.mxu0 %v779
        %798 = vmatprep.subr.mxu0 0.0
        %799 = vmatpush1.msra.mxu0 0.0
        %800 = vmatprep.subr.mxu0 0.0
        %801 = vmatpush1.msra.mxu0 0.0
        %802 = vmatprep.subr.mxu0 0.0
        %803 = vmatpush1.msra.mxu0 0.0
        %804 = vmatprep.subr.mxu0 0.0
        %805 = vmatpush1.msra.mxu0 0.0
        %806 = vmatprep.subr.mxu0 0.0
        %807 = vmatpush1.msra.mxu0 0.0
        %808 = vmatprep.subr.mxu0 0.0
        %809 = vmatpush1.msra.mxu0 0.0
        %810 = vmatprep.subr.mxu0 0.0
        %811 = vmatpush1.msra.mxu0 0.0
        %812 = vmatprep.subr.mxu0 0.0
        %813 = vmatpush1.msra.mxu0 0.0
        %814 = vmatprep.subr.mxu0 0.0
        %815 = vmatpush1.msra.mxu0 0.0
        %816 = vmatprep.subr.mxu0 0.0
        %817 = vmatpush1.msra.mxu0 0.0
        %818 = vmatprep.subr.mxu0 0.0
        %819 = vmatpush1.msra.mxu0 0.0
        %820 = vmatprep.subr.mxu0 0.0
        %821 = vmatpush1.msra.mxu0 0.0
        %822 = vmatprep.subr.mxu0 0.0
        %823 = vmatpush1.msra.mxu0 0.0
        %824 = vmatprep.subr.mxu0 0.0
        %825 = vmatpush1.msra.mxu0 0.0
        %826 = vmatprep.subr.mxu0 0.0
        %827 = vmatpush1.msra.mxu0 0.0
        %828 = vmatprep.subr.mxu0 0.0
        %829 = vmatpush1.msra.mxu0 0.0
        %830 = vmatprep.subr.mxu0 0.0
        %831 = vmatpush1.msra.mxu0 0.0
        %832 = vmatprep.subr.mxu0 0.0
        %833 = vmatpush1.msra.mxu0 0.0
        %834 = vmatprep.subr.mxu0 0.0
        %835 = vmatpush1.msra.mxu0 0.0
        %836 = vmatprep.subr.mxu0 0.0
        %837 = vmatpush1.msra.mxu0 0.0
        %838 = vmatprep.subr.mxu0 0.0
        %839 = vmatpush1.msra.mxu0 0.0
        %840 = vmatprep.subr.mxu0 0.0
        %841 = vmatpush1.msra.mxu0 0.0
        %842 = vmatprep.subr.mxu0 0.0
        %843 = vmatpush1.msra.mxu0 0.0
        %844 = vmatprep.subr.mxu0 0.0
        %845 = vmatpush1.msra.mxu0 0.0
        %846 = vmatprep.subr.mxu0 0.0
        %847 = vmatpush1.msra.mxu0 0.0
        %848 = vmatprep.subr.mxu0 0.0
        %849 = vmatpush1.msra.mxu0 0.0
        %850 = vmatprep.subr.mxu0 0.0
        %851 = vmatpush1.msra.mxu0 0.0
        %852 = vmatprep.subr.mxu0 0.0
        %853 = vmatpush1.msra.mxu0 0.0
        %854 = vmatprep.mubr.f32.mxu0 0.0
        %855 = vmatmul.mubr.f32.gmra.mrb[0].mxu0 %v788
        %v856 = vpop.f32.mrb[0].mxu0
        %v857 = vadd.f32 %v785, %v856
        %v858 = vpop.f32.mrb[0].mxu0
        %859 = vdwg.mxu0
        %860 = vst.msk [vmem:[%s283] sm:$0xff] %vm289, %v857
        %s861 = sand.u32 %s142, 1
        %s862 = scalar_lea.sflag [#allocation4], %s861
        %s863 = sand.u32 %s142, 1
        %s864 = smul.addr %s863, 8
        %s865 = scalar_lea.vmem [#allocation10], %s864
        // Predicated region
        $region57: #{tpu_custom_call.1} parent=39 // pred_check
          %p866 = pneg %p152
        $region58: #{tpu_custom_call.1} parent=39 // pred_check_branch
          %868 = sbr.rel (%p866) target = $region60
        $region59: #{tpu_custom_call.1} parent=39 // pred_region
          %s870 = ssub.s32 128, 128
          %871 = vsyncadd %s862, %s870
          %s872 = smul.addr %s24, 128
          %s873 = scalar_lea.hbm %s5, %s872
          %s875 = sshll.u32 %s865, 4
          %s876 = int_to_ptr.vmem [resolvable:$true] %s875
          %878 = dma.vmem_to_hbm [thread:$0]  %s876, 128, %s873, %s862
        $region60: #{tpu_custom_call.1} parent=39 // pred_fallthru
          _
      $region40: #{tpu_custom_call.1} parent=5 // pred_fallthru
        _
      %p879 = scmp.le.s32.totalorder 2, %s19
      // Predicated region
      $region61: #{tpu_custom_call.1} parent=5 // pred_check
        %p880 = pneg %p879
      $region62: #{tpu_custom_call.1} parent=5 // pred_check_branch
        %882 = sbr.rel (%p880) target = $region64
      $region63: #{tpu_custom_call.1} parent=5 // pred_region
        %s883 = ssub.s32 %s19, 2
        // Predicated region
        $region65: #{tpu_custom_call.1} parent=63 // pred_check
          %p884 = pneg %p158
        $region66: #{tpu_custom_call.1} parent=63 // pred_check_branch
          %886 = sbr.rel (%p884) target = $region68
        $region67: #{tpu_custom_call.1} parent=63 // pred_region
          %s887 = sand.u32 %s143, 1
          %s888 = scalar_lea.sflag [#allocation4], %s887
          %s889 = sand.u32 %s143, 1
          %s890 = smul.addr %s889, 8
          %s891 = scalar_lea.vmem [#allocation10], %s890
          %892 = dma.done %s888, 128
        $region68: #{tpu_custom_call.1} parent=63 // pred_fallthru
          _
      $region64: #{tpu_custom_call.1} parent=5 // pred_fallthru
        _
    $region6: #{tpu_custom_call.1} parent=1 // loop_footer
      %s23 = sadd.s32 1, %s19
    $region7: #{tpu_custom_call.1} parent=1 // loop_footer_branch
      %18 = sbr.rel target = $region3
    $region8: #{tpu_custom_call.1} parent=1 // loop_exit
      _
    %893 = vsyncpa [#allocation3], 1
    %s894 = scalar_lea.sflag [#allocation3], 1
    %895 = vsyncpa %s894, 1
    %896 = vsyncpa [#allocation6], 1
    %897 = vsyncpa [#allocation9], 1
    %898 = vsyncpa [#allocation4], 1
    %s899 = scalar_lea.sflag [#allocation4], 1
    %900 = vsyncpa %s899, 1

// kernel: tpu_custom_call.1
$region0: #{tpu_custom_call.1}
  #allocation0 [shape = 'u32[]', space=smem, size = 0x4, offset = 0x4, fixed_abs, tag = 'smem constant byte address 0x4 - core index']
  #allocation1 [shape = 'u32[144,128]{1,0:T(1,128)}', space=vmem, size = 0x12000, scoped, tag = 'internal scratch']
  %s0 = inlined_call_operand.hbm [shape: f32[2,8,32], index: 0, kind: input, shape index: {}]
  %s1 = inlined_call_operand.hbm [shape: f32[3,32,32], index: 1, kind: input, shape index: {}]
  %s2 = inlined_call_operand.hbm [shape: f32[32,32], index: 2, kind: input, shape index: {}]
  %s3 = inlined_call_operand.vmem [shape: f32[1,32], index: 3, kind: input, shape index: {}]
  %s4 = inlined_call_operand.hbm [shape: f32[32,32], index: 4, kind: input, shape index: {}]
  %s5 = inlined_call_operand.hbm [shape: f32[2,8,32], index: 5, kind: output, shape index: {}]
  %s6 = sld [smem:[#allocation0]]
  $region69: #{tpu_custom_call.1} parent=0
    _
  %s8 = ssub.s32 1, %s6
  %s9 = scalar_select 0, %s8, %s6
  $region1: #{tpu_custom_call.1} parent=0
    #allocation2 [shape = 'u8[8192]{0}', space=vmem, size = 0x2000, scoped, tag = 'input window, operand 0']
    #allocation3 [shape = 's32[2]{0}', space=sflag, size = 0x8, scoped, tag = 'scoped memory for tpu_custom_call.1']
    #allocation4 [shape = 's32[2]{0}', space=sflag, size = 0x8, scoped, tag = 'scoped memory for tpu_custom_call.1']
    #allocation5 [shape = 'u8[49152]{0}', space=vmem, size = 0xc000, scoped, tag = 'input window, operand 1, single buffered']
    #allocation6 [shape = 's32[1]{0}', space=sflag, size = 0x4, scoped, tag = 'scoped memory for tpu_custom_call.1']
    #allocation7 [shape = 'u8[16384]{0}', space=vmem, size = 0x4000, scoped, tag = 'input window, operand 2, single buffered']
    #allocation8 [shape = 'u8[16384]{0}', space=vmem, size = 0x4000, scoped, tag = 'input window, operand 4, single buffered']
    #allocation9 [shape = 's32[1]{0}', space=sflag, size = 0x4, scoped, tag = 'scoped memory for tpu_custom_call.1']
    #allocation10 [shape = 'u8[8192]{0}', space=vmem, size = 0x2000, scoped, tag = 'output window, operand 0']
    %10 = vsyncpa [#allocation3], 0
    %s11 = scalar_lea.sflag [#allocation3], 1
    %12 = vsyncpa %s11, 0
    %13 = vsyncpa [#allocation6], 0
    %14 = vsyncpa [#allocation9], 0
    %15 = vsyncpa [#allocation4], 0
    %s16 = scalar_lea.sflag [#allocation4], 1
    %17 = vsyncpa %s16, 0
    loop: start=0, step=1, limit=4
    $region2: #{tpu_custom_call.1} parent=1 // loop_pre_header
      _
    $region3: #{tpu_custom_call.1} parent=1 // loop_header
      %s19 = sphi 0, %s23
      %p20 = scmp.ge.s32.totalorder %s19, 4
      %s29 = sphi 0, %s31
      %s32 = sphi 0, %s29
      %s33 = sphi 0, %s32
      %s49 = sphi 0, %s33
      %s53 = sphi 0, %s53
      %s55 = sphi 0, %s53
      %s56 = sphi 0, %s55
      %s70 = sphi 0, %s56
      %s74 = sphi 0, %s74
      %s76 = sphi 0, %s74
      %s77 = sphi 0, %s76
      %s91 = sphi 0, %s77
      %s95 = sphi 0, %s95
      %s97 = sphi 0, %s95
      %s98 = sphi 0, %s97
      %s112 = sphi 0, %s98
      %s116 = sphi 0, %s116
      %s118 = sphi 0, %s116
      %s119 = sphi 0, %s118
      %s133 = sphi 0, %s119
      %s139 = sphi 0, %s141
      %s142 = sphi 0, %s139
      %s143 = sphi 0, %s142
      %s159 = sphi 0, %s143
    $region4: #{tpu_custom_call.1} parent=1 // loop_header_branch
      %22 = sbr.rel (%p20) target = $region8
    $region5: #{tpu_custom_call.1} parent=1 // loop_body
      %s24 = ssub.s32 %s19, 1
      %s25 = ssub.s32 %s19, 2
      %s26 = sadd.s32 %s19, 1
      %s27 = ssub.s32 %s19, %s26
      %p28 = scmp.eq.s32.totalorder %s27, 0
      %s30 = sadd.s32 %s29, 1
      %s31 = scalar_select %p28, %s29, %s30
      %p34 = pneg %p28
      %p35 = scmp.eq.s32.totalorder %s19, 1
      %p36 = por %p34, %p35
      %p37 = scmp.ne.s32.totalorder %s29, %s32
      %p38 = scmp.eq.s32.totalorder %s19, 0
      %p39 = por %p37, %p38
      %p40 = scmp.ne.s32.totalorder %s29, %s32
      %p41 = scmp.eq.s32.totalorder %s24, 1
      %p42 = por %p40, %p41
      %p43 = scmp.ne.s32.totalorder %s32, %s33
      %p44 = scmp.eq.s32.totalorder %s24, 0
      %p45 = por %p43, %p44
      %p46 = scmp.ne.s32.totalorder %s32, %s33
      %p47 = scmp.eq.s32.totalorder %s25, 1
      %p48 = por %p46, %p47
      %p50 = scmp.ne.s32.totalorder %s33, %s49
      %p51 = scmp.eq.s32.totalorder %s25, 0
      %p52 = por %p50, %p51
      %s54 = sadd.s32 %s53, 1
      %p57 = scmp.eq.s32.totalorder %s19, 1
      %p58 = scmp.ne.s32.totalorder %s53, %s55
      %p59 = scmp.eq.s32.totalorder %s19, 0
      %p60 = por %p58, %p59
      %p61 = scmp.ne.s32.totalorder %s53, %s55
      %p62 = scmp.eq.s32.totalorder %s24, 1
      %p63 = por %p61, %p62
      %p64 = scmp.ne.s32.totalorder %s55, %s56
      %p65 = scmp.eq.s32.totalorder %s24, 0
      %p66 = por %p64, %p65
      %p67 = scmp.ne.s32.totalorder %s55, %s56
      %p68 = scmp.eq.s32.totalorder %s25, 1
      %p69 = por %p67, %p68
      %p71 = scmp.ne.s32.totalorder %s56, %s70
      %p72 = scmp.eq.s32.totalorder %s25, 0
      %p73 = por %p71, %p72
      %s75 = sadd.s32 %s74, 1
      %p78 = scmp.eq.s32.totalorder %s19, 1
      %p79 = scmp.ne.s32.totalorder %s74, %s76
      %p80 = scmp.eq.s32.totalorder %s19, 0
      %p81 = por %p79, %p80
      %p82 = scmp.ne.s32.totalorder %s74, %s76
      %p83 = scmp.eq.s32.totalorder %s24, 1
      %p84 = por %p82, %p83
      %p85 = scmp.ne.s32.totalorder %s76, %s77
      %p86 = scmp.eq.s32.totalorder %s24, 0
      %p87 = por %p85, %p86
      %p88 = scmp.ne.s32.totalorder %s76, %s77
      %p89 = scmp.eq.s32.totalorder %s25, 1
      %p90 = por %p88, %p89
      %p92 = scmp.ne.s32.totalorder %s77, %s91
      %p93 = scmp.eq.s32.totalorder %s25, 0
      %p94 = por %p92, %p93
      %s96 = sadd.s32 %s95, 1
      %p99 = scmp.eq.s32.totalorder %s19, 1
      %p100 = scmp.ne.s32.totalorder %s95, %s97
      %p101 = scmp.eq.s32.totalorder %s19, 0
      %p102 = por %p100, %p101
      %p103 = scmp.ne.s32.totalorder %s95, %s97
      %p104 = scmp.eq.s32.totalorder %s24, 1
      %p105 = por %p103, %p104
      %p106 = scmp.ne.s32.totalorder %s97, %s98
      %p107 = scmp.eq.s32.totalorder %s24, 0
      %p108 = por %p106, %p107
      %p109 = scmp.ne.s32.totalorder %s97, %s98
      %p110 = scmp.eq.s32.totalorder %s25, 1
      %p111 = por %p109, %p110
      %p113 = scmp.ne.s32.totalorder %s98, %s112
      %p114 = scmp.eq.s32.totalorder %s25, 0
      %p115 = por %p113, %p114
      %s117 = sadd.s32 %s116, 1
      %p120 = scmp.eq.s32.totalorder %s19, 1
      %p121 = scmp.ne.s32.totalorder %s116, %s118
      %p122 = scmp.eq.s32.totalorder %s19, 0
      %p123 = por %p121, %p122
      %p124 = scmp.ne.s32.totalorder %s116, %s118
      %p125 = scmp.eq.s32.totalorder %s24, 1
      %p126 = por %p124, %p125
      %p127 = scmp.ne.s32.totalorder %s118, %s119
      %p128 = scmp.eq.s32.totalorder %s24, 0
      %p129 = por %p127, %p128
      %p130 = scmp.ne.s32.totalorder %s118, %s119
      %p131 = scmp.eq.s32.totalorder %s25, 1
      %p132 = por %p130, %p131
      %p134 = scmp.ne.s32.totalorder %s119, %s133
      %p135 = scmp.eq.s32.totalorder %s25, 0
      %p136 = por %p134, %p135
      %s137 = ssub.s32 %s19, %s26
      %p138 = scmp.eq.s32.totalorder %s137, 0
      %s140 = sadd.s32 %s139, 1
      %s141 = scalar_select %p138, %s139, %s140
      %p144 = pneg %p138
      %p145 = scmp.eq.s32.totalorder %s19, 1
      %p146 = por %p144, %p145
      %p147 = scmp.ne.s32.totalorder %s139, %s142
      %p148 = scmp.eq.s32.totalorder %s19, 0
      %p149 = por %p147, %p148
      %p150 = scmp.ne.s32.totalorder %s139, %s142
      %p151 = scmp.eq.s32.totalorder %s24, 1
      %p152 = por %p150, %p151
      %p153 = scmp.ne.s32.totalorder %s142, %s143
      %p154 = scmp.eq.s32.totalorder %s24, 0
      %p155 = por %p153, %p154
      %p156 = scmp.ne.s32.totalorder %s142, %s143
      %p157 = scmp.eq.s32.totalorder %s25, 1
      %p158 = por %p156, %p157
      %p160 = scmp.ne.s32.totalorder %s143, %s159
      %p161 = scmp.eq.s32.totalorder %s25, 0
      %p162 = por %p160, %p161
      %p163 = scmp.le.s32.totalorder 1, %s19
      %p164 = scmp.lt.s32.totalorder %s19, 3
      %p165 = pnand %p163, %p164
      %p166 = pneg %p165
      // Predicated region
      $region9: #{tpu_custom_call.1} parent=5 // pred_check
        _
      $region10: #{tpu_custom_call.1} parent=5 // pred_check_branch
        %168 = sbr.rel (%p165) target = $region12
      $region11: #{tpu_custom_call.1} parent=5 // pred_region
        %s169 = ssub.s32 %s19, 1
        // Predicated region
        $region13: #{tpu_custom_call.1} parent=11 // pred_check
          %p170 = pneg %p66
        $region14: #{tpu_custom_call.1} parent=11 // pred_check_branch
          %172 = sbr.rel (%p170) target = $region16
        $region15: #{tpu_custom_call.1} parent=11 // pred_region
          %s174 = ssub.s32 1536, 1536
          %175 = vsyncadd [#allocation6], %s174
          %s176 = sshll.u32 [#allocation5], 4
          %s177 = int_to_ptr.vmem [resolvable:$true] %s176
          %182 = dma.hbm_to_vmem [thread:$0]  %s1, 1536, %s177, [#allocation6], 128, 128, 8
        $region16: #{tpu_custom_call.1} parent=11 // pred_fallthru
          _
        // Predicated region
        $region17: #{tpu_custom_call.1} parent=11 // pred_check
          %p183 = pneg %p87
        $region18: #{tpu_custom_call.1} parent=11 // pred_check_branch
          %185 = sbr.rel (%p183) target = $region20
        $region19: #{tpu_custom_call.1} parent=11 // pred_region
          %s187 = ssub.s32 512, 512
          %188 = vsyncadd [#allocation6], %s187
          %s189 = sshll.u32 [#allocation7], 4
          %s190 = int_to_ptr.vmem [resolvable:$true] %s189
          %195 = dma.hbm_to_vmem [thread:$0]  %s2, 512, %s190, [#allocation6], 128, 128, 8
        $region20: #{tpu_custom_call.1} parent=11 // pred_fallthru
          _
        // Predicated region
        $region21: #{tpu_custom_call.1} parent=11 // pred_check
          %p196 = pneg %p108
        $region22: #{tpu_custom_call.1} parent=11 // pred_check_branch
          %198 = sbr.rel (%p196) target = $region24
        $region23: #{tpu_custom_call.1} parent=11 // pred_region
          _
        $region24: #{tpu_custom_call.1} parent=11 // pred_fallthru
          _
        // Predicated region
        $region25: #{tpu_custom_call.1} parent=11 // pred_check
          %p199 = pneg %p129
        $region26: #{tpu_custom_call.1} parent=11 // pred_check_branch
          %201 = sbr.rel (%p199) target = $region28
        $region27: #{tpu_custom_call.1} parent=11 // pred_region
          %s203 = ssub.s32 512, 512
          %204 = vsyncadd [#allocation9], %s203
          %s205 = sshll.u32 [#allocation8], 4
          %s206 = int_to_ptr.vmem [resolvable:$true] %s205
          %211 = dma.hbm_to_vmem [thread:$0]  %s4, 512, %s206, [#allocation9], 128, 128, 8
        $region28: #{tpu_custom_call.1} parent=11 // pred_fallthru
          _
      $region12: #{tpu_custom_call.1} parent=5 // pred_fallthru
        _
      %p212 = scmp.lt.s32.totalorder %s19, 2
      // Predicated region
      $region29: #{tpu_custom_call.1} parent=5 // pred_check
        %p213 = pneg %p212
      $region30: #{tpu_custom_call.1} parent=5 // pred_check_branch
        %215 = sbr.rel (%p213) target = $region32
      $region31: #{tpu_custom_call.1} parent=5 // pred_region
        // Predicated region
        $region33: #{tpu_custom_call.1} parent=31 // pred_check
          %p216 = pneg %p39
        $region34: #{tpu_custom_call.1} parent=31 // pred_check_branch
          %218 = sbr.rel (%p216) target = $region36
        $region35: #{tpu_custom_call.1} parent=31 // pred_region
          %s219 = sand.u32 %s29, 1
          %s220 = scalar_lea.sflag [#allocation3], %s219
          %s221 = sand.u32 %s29, 1
          %s222 = smul.addr %s221, 8
          %s223 = scalar_lea.vmem [#allocation2], %s222
          %s225 = ssub.s32 128, 128
          %226 = vsyncadd %s220, %s225
          %s227 = smul.addr %s19, 128
          %s228 = scalar_lea.hbm %s0, %s227
          %s230 = sshll.u32 %s223, 4
          %s231 = int_to_ptr.vmem [resolvable:$true] %s230
          %233 = dma.hbm_to_vmem [thread:$0]  %s228, 128, %s231, %s220
        $region36: #{tpu_custom_call.1} parent=31 // pred_fallthru
          _
      $region32: #{tpu_custom_call.1} parent=5 // pred_fallthru
        _
      %p234 = scmp.le.s32.totalorder 1, %s19
      %p235 = scmp.lt.s32.totalorder %s19, 3
      %p236 = pnand %p234, %p235
      %p237 = pneg %p236
      // Predicated region
      $region37: #{tpu_custom_call.1} parent=5 // pred_check
        _
      $region38: #{tpu_custom_call.1} parent=5 // pred_check_branch
        %239 = sbr.rel (%p236) target = $region40
      $region39: #{tpu_custom_call.1} parent=5 // pred_region
        %s240 = ssub.s32 %s19, 1
        %s241 = sand.u32 %s32, 1
        %s242 = scalar_lea.sflag [#allocation3], %s241
        %s243 = sand.u32 %s32, 1
        %s244 = smul.addr %s243, 8
        %s245 = scalar_lea.vmem [#allocation2], %s244
        // Predicated region
        $region41: #{tpu_custom_call.1} parent=39 // pred_check
          %p246 = pneg %p45
        $region42: #{tpu_custom_call.1} parent=39 // pred_check_branch
          %248 = sbr.rel (%p246) target = $region44
        $region43: #{tpu_custom_call.1} parent=39 // pred_region
          %249 = dma.done %s242, 128
        $region44: #{tpu_custom_call.1} parent=39 // pred_fallthru
          _
        // Predicated region
        $region45: #{tpu_custom_call.1} parent=39 // pred_check
          %p250 = pneg %p66
        $region46: #{tpu_custom_call.1} parent=39 // pred_check_branch
          %252 = sbr.rel (%p250) target = $region48
        $region47: #{tpu_custom_call.1} parent=39 // pred_region
          %253 = dma.done [#allocation6], 1536
        $region48: #{tpu_custom_call.1} parent=39 // pred_fallthru
          _
        // Predicated region
        $region49: #{tpu_custom_call.1} parent=39 // pred_check
          %p254 = pneg %p87
        $region50: #{tpu_custom_call.1} parent=39 // pred_check_branch
          %256 = sbr.rel (%p254) target = $region52
        $region51: #{tpu_custom_call.1} parent=39 // pred_region
          %257 = dma.done [#allocation6], 512
        $region52: #{tpu_custom_call.1} parent=39 // pred_fallthru
          _
        // Predicated region
        $region53: #{tpu_custom_call.1} parent=39 // pred_check
          %p258 = pneg %p129
        $region54: #{tpu_custom_call.1} parent=39 // pred_check_branch
          %260 = sbr.rel (%p258) target = $region56
        $region55: #{tpu_custom_call.1} parent=39 // pred_region
          %261 = dma.done [#allocation9], 512
        $region56: #{tpu_custom_call.1} parent=39 // pred_fallthru
          _
        %s262 = sand.u32 %s32, 1
        %s263 = scalar_lea.sflag [#allocation3], %s262
        %s264 = sand.u32 %s32, 1
        %s265 = smul.addr %s264, 8
        %s266 = scalar_lea.vmem [#allocation2], %s265
        %p267 = pneg %p45
        %p268 = pneg %p42
        %p269 = pneg %p66
        %p270 = pneg %p63
        %p271 = pneg %p87
        %p272 = pneg %p84
        %p273 = pneg %p108
        %p274 = pneg %p105
        %p275 = pneg %p129
        %p276 = pneg %p126
        %p277 = pneg %p155
        %p278 = pneg %p152
        %s279 = sand.u32 %s142, 1
        %s280 = scalar_lea.sflag [#allocation4], %s279
        %s281 = sand.u32 %s142, 1
        %s282 = smul.addr %s281, 8
        %s283 = scalar_lea.vmem [#allocation10], %s282
        %v284 = vld [vmem:[%s245] sm:$0xff]
        %v285 = vld [vmem:[#allocation5] sm:$0xff]
        %v286 = vld [vmem:[#allocation5 + $0x8] sm:$0xff]
        %v287 = vld [vmem:[#allocation5 + $0x10] sm:$0xff]
        %v288 = vld [vmem:[#allocation5 + $0x18] sm:$0xff]
        %vm289 = vcmask 261120
        %v291 = vsel %vm289, %v284, 0
        %293 = vmatprep.subr.mxu0 0.0
        %294 = vmatpush1.msra.mxu0 %v285
        %295 = vmatprep.subr.mxu0 0.0
        %296 = vmatpush1.msra.mxu0 %v286
        %297 = vmatprep.subr.mxu0 0.0
        %298 = vmatpush1.msra.mxu0 %v287
        %299 = vmatprep.subr.mxu0 0.0
        %300 = vmatpush1.msra.mxu0 %v288
        %301 = vmatprep.subr.mxu0 0.0
        %302 = vmatpush1.msra.mxu0 0.0
        %303 = vmatprep.subr.mxu0 0.0
        %304 = vmatpush1.msra.mxu0 0.0
        %305 = vmatprep.subr.mxu0 0.0
        %306 = vmatpush1.msra.mxu0 0.0
        %307 = vmatprep.subr.mxu0 0.0
        %308 = vmatpush1.msra.mxu0 0.0
        %309 = vmatprep.subr.mxu0 0.0
        %310 = vmatpush1.msra.mxu0 0.0
        %311 = vmatprep.subr.mxu0 0.0
        %312 = vmatpush1.msra.mxu0 0.0
        %313 = vmatprep.subr.mxu0 0.0
        %314 = vmatpush1.msra.mxu0 0.0
        %315 = vmatprep.subr.mxu0 0.0
        %316 = vmatpush1.msra.mxu0 0.0
        %317 = vmatprep.subr.mxu0 0.0
        %318 = vmatpush1.msra.mxu0 0.0
        %319 = vmatprep.subr.mxu0 0.0
        %320 = vmatpush1.msra.mxu0 0.0
        %321 = vmatprep.subr.mxu0 0.0
        %322 = vmatpush1.msra.mxu0 0.0
        %323 = vmatprep.subr.mxu0 0.0
        %324 = vmatpush1.msra.mxu0 0.0
        %325 = vmatprep.subr.mxu0 0.0
        %326 = vmatpush1.msra.mxu0 0.0
        %327 = vmatprep.subr.mxu0 0.0
        %328 = vmatpush1.msra.mxu0 0.0
        %329 = vmatprep.subr.mxu0 0.0
        %330 = vmatpush1.msra.mxu0 0.0
        %331 = vmatprep.subr.mxu0 0.0
        %332 = vmatpush1.msra.mxu0 0.0
        %333 = vmatprep.subr.mxu0 0.0
        %334 = vmatpush1.msra.mxu0 0.0
        %335 = vmatprep.subr.mxu0 0.0
        %336 = vmatpush1.msra.mxu0 0.0
        %337 = vmatprep.subr.mxu0 0.0
        %338 = vmatpush1.msra.mxu0 0.0
        %339 = vmatprep.subr.mxu0 0.0
        %340 = vmatpush1.msra.mxu0 0.0
        %341 = vmatprep.subr.mxu0 0.0
        %342 = vmatpush1.msra.mxu0 0.0
        %343 = vmatprep.subr.mxu0 0.0
        %344 = vmatpush1.msra.mxu0 0.0
        %345 = vmatprep.subr.mxu0 0.0
        %346 = vmatpush1.msra.mxu0 0.0
        %347 = vmatprep.subr.mxu0 0.0
        %348 = vmatpush1.msra.mxu0 0.0
        %349 = vmatprep.subr.mxu0 0.0
        %350 = vmatpush1.msra.mxu0 0.0
        %351 = vmatprep.subr.mxu0 0.0
        %352 = vmatpush1.msra.mxu0 0.0
        %353 = vmatprep.subr.mxu0 0.0
        %354 = vmatpush1.msra.mxu0 0.0
        %355 = vmatprep.subr.mxu0 0.0
        %356 = vmatpush1.msra.mxu0 0.0
        %357 = vmatprep.mubr.f32.mxu0 0.0
        %358 = vmatmul.mubr.f32.gmra.mrb[0].mxu0 %v291
        %v359 = vpop.f32.mrb[0].mxu0
        %v360 = vadd.f32 0.0, %v359
        %v361 = vpop.f32.mrb[0].mxu0
        %362 = vdwg.mxu0
        %s363 = scalar_lea.vmem [#allocation5], 32
        %v364 = vld [vmem:[%s363] sm:$0xff]
        %v365 = vld [vmem:[%s363 + $0x8] sm:$0xff]
        %v366 = vld [vmem:[%s363 + $0x10] sm:$0xff]
        %v367 = vld [vmem:[%s363 + $0x18] sm:$0xff]
        %368 = vmatprep.subr.mxu0 0.0
        %369 = vmatpush1.msra.mxu0 %v364
        %370 = vmatprep.subr.mxu0 0.0
        %371 = vmatpush1.msra.mxu0 %v365
        %372 = vmatprep.subr.mxu0 0.0
        %373 = vmatpush1.msra.mxu0 %v366
        %374 = vmatprep.subr.mxu0 0.0
        %375 = vmatpush1.msra.mxu0 %v367
        %376 = vmatprep.subr.mxu0 0.0
        %377 = vmatpush1.msra.mxu0 0.0
        %378 = vmatprep.subr.mxu0 0.0
        %379 = vmatpush1.msra.mxu0 0.0
        %380 = vmatprep.subr.mxu0 0.0
        %381 = vmatpush1.msra.mxu0 0.0
        %382 = vmatprep.subr.mxu0 0.0
        %383 = vmatpush1.msra.mxu0 0.0
        %384 = vmatprep.subr.mxu0 0.0
        %385 = vmatpush1.msra.mxu0 0.0
        %386 = vmatprep.subr.mxu0 0.0
        %387 = vmatpush1.msra.mxu0 0.0
        %388 = vmatprep.subr.mxu0 0.0
        %389 = vmatpush1.msra.mxu0 0.0
        %390 = vmatprep.subr.mxu0 0.0
        %391 = vmatpush1.msra.mxu0 0.0
        %392 = vmatprep.subr.mxu0 0.0
        %393 = vmatpush1.msra.mxu0 0.0
        %394 = vmatprep.subr.mxu0 0.0
        %395 = vmatpush1.msra.mxu0 0.0
        %396 = vmatprep.subr.mxu0 0.0
        %397 = vmatpush1.msra.mxu0 0.0
        %398 = vmatprep.subr.mxu0 0.0
        %399 = vmatpush1.msra.mxu0 0.0
        %400 = vmatprep.subr.mxu0 0.0
        %401 = vmatpush1.msra.mxu0 0.0
        %402 = vmatprep.subr.mxu0 0.0
        %403 = vmatpush1.msra.mxu0 0.0
        %404 = vmatprep.subr.mxu0 0.0
        %405 = vmatpush1.msra.mxu0 0.0
        %406 = vmatprep.subr.mxu0 0.0
        %407 = vmatpush1.msra.mxu0 0.0
        %408 = vmatprep.subr.mxu0 0.0
        %409 = vmatpush1.msra.mxu0 0.0
        %410 = vmatprep.subr.mxu0 0.0
        %411 = vmatpush1.msra.mxu0 0.0
        %412 = vmatprep.subr.mxu0 0.0
        %413 = vmatpush1.msra.mxu0 0.0
        %414 = vmatprep.subr.mxu0 0.0
        %415 = vmatpush1.msra.mxu0 0.0
        %416 = vmatprep.subr.mxu0 0.0
        %417 = vmatpush1.msra.mxu0 0.0
        %418 = vmatprep.subr.mxu0 0.0
        %419 = vmatpush1.msra.mxu0 0.0
        %420 = vmatprep.subr.mxu0 0.0
        %421 = vmatpush1.msra.mxu0 0.0
        %422 = vmatprep.subr.mxu0 0.0
        %423 = vmatpush1.msra.mxu0 0.0
        %424 = vmatprep.subr.mxu0 0.0
        %425 = vmatpush1.msra.mxu0 0.0
        %426 = vmatprep.subr.mxu0 0.0
        %427 = vmatpush1.msra.mxu0 0.0
        %428 = vmatprep.subr.mxu0 0.0
        %429 = vmatpush1.msra.mxu0 0.0
        %430 = vmatprep.subr.mxu0 0.0
        %431 = vmatpush1.msra.mxu0 0.0
        %432 = vmatprep.mubr.f32.mxu0 0.0
        %433 = vmatmul.mubr.f32.gmra.mrb[0].mxu0 %v291
        %v434 = vpop.f32.mrb[0].mxu0
        %v435 = vadd.f32 0.0, %v434
        %v436 = vpop.f32.mrb[0].mxu0
        %437 = vdwg.mxu0
        %s438 = scalar_lea.vmem [#allocation5], 64
        %v439 = vld [vmem:[%s438] sm:$0xff]
        %v440 = vld [vmem:[%s438 + $0x8] sm:$0xff]
        %v441 = vld [vmem:[%s438 + $0x10] sm:$0xff]
        %v442 = vld [vmem:[%s438 + $0x18] sm:$0xff]
        %443 = vmatprep.subr.mxu0 0.0
        %444 = vmatpush1.msra.mxu0 %v439
        %445 = vmatprep.subr.mxu0 0.0
        %446 = vmatpush1.msra.mxu0 %v440
        %447 = vmatprep.subr.mxu0 0.0
        %448 = vmatpush1.msra.mxu0 %v441
        %449 = vmatprep.subr.mxu0 0.0
        %450 = vmatpush1.msra.mxu0 %v442
        %451 = vmatprep.subr.mxu0 0.0
        %452 = vmatpush1.msra.mxu0 0.0
        %453 = vmatprep.subr.mxu0 0.0
        %454 = vmatpush1.msra.mxu0 0.0
        %455 = vmatprep.subr.mxu0 0.0
        %456 = vmatpush1.msra.mxu0 0.0
        %457 = vmatprep.subr.mxu0 0.0
        %458 = vmatpush1.msra.mxu0 0.0
        %459 = vmatprep.subr.mxu0 0.0
        %460 = vmatpush1.msra.mxu0 0.0
        %461 = vmatprep.subr.mxu0 0.0
        %462 = vmatpush1.msra.mxu0 0.0
        %463 = vmatprep.subr.mxu0 0.0
        %464 = vmatpush1.msra.mxu0 0.0
        %465 = vmatprep.subr.mxu0 0.0
        %466 = vmatpush1.msra.mxu0 0.0
        %467 = vmatprep.subr.mxu0 0.0
        %468 = vmatpush1.msra.mxu0 0.0
        %469 = vmatprep.subr.mxu0 0.0
        %470 = vmatpush1.msra.mxu0 0.0
        %471 = vmatprep.subr.mxu0 0.0
        %472 = vmatpush1.msra.mxu0 0.0
        %473 = vmatprep.subr.mxu0 0.0
        %474 = vmatpush1.msra.mxu0 0.0
        %475 = vmatprep.subr.mxu0 0.0
        %476 = vmatpush1.msra.mxu0 0.0
        %477 = vmatprep.subr.mxu0 0.0
        %478 = vmatpush1.msra.mxu0 0.0
        %479 = vmatprep.subr.mxu0 0.0
        %480 = vmatpush1.msra.mxu0 0.0
        %481 = vmatprep.subr.mxu0 0.0
        %482 = vmatpush1.msra.mxu0 0.0
        %483 = vmatprep.subr.mxu0 0.0
        %484 = vmatpush1.msra.mxu0 0.0
        %485 = vmatprep.subr.mxu0 0.0
        %486 = vmatpush1.msra.mxu0 0.0
        %487 = vmatprep.subr.mxu0 0.0
        %488 = vmatpush1.msra.mxu0 0.0
        %489 = vmatprep.subr.mxu0 0.0
        %490 = vmatpush1.msra.mxu0 0.0
        %491 = vmatprep.subr.mxu0 0.0
        %492 = vmatpush1.msra.mxu0 0.0
        %493 = vmatprep.subr.mxu0 0.0
        %494 = vmatpush1.msra.mxu0 0.0
        %495 = vmatprep.subr.mxu0 0.0
        %496 = vmatpush1.msra.mxu0 0.0
        %497 = vmatprep.subr.mxu0 0.0
        %498 = vmatpush1.msra.mxu0 0.0
        %499 = vmatprep.subr.mxu0 0.0
        %500 = vmatpush1.msra.mxu0 0.0
        %501 = vmatprep.subr.mxu0 0.0
        %502 = vmatpush1.msra.mxu0 0.0
        %503 = vmatprep.subr.mxu0 0.0
        %504 = vmatpush1.msra.mxu0 0.0
        %505 = vmatprep.subr.mxu0 0.0
        %506 = vmatpush1.msra.mxu0 0.0
        %507 = vmatprep.mubr.f32.mxu0 0.0
        %508 = vmatmul.mubr.f32.gmra.mrb[0].mxu0 %v291
        %v509 = vpop.f32.mrb[0].mxu0
        %v510 = vadd.f32 0.0, %v509
        %v511 = vpop.f32.mrb[0].mxu0
        %512 = vdwg.mxu0
        %v513 = vld [vmem:[#allocation8] sm:$0xff]
        %v514 = vld [vmem:[#allocation8 + $0x8] sm:$0xff]
        %v515 = vld [vmem:[#allocation8 + $0x10] sm:$0xff]
        %v516 = vld [vmem:[#allocation8 + $0x18] sm:$0xff]
        %517 = vxpose.xlu0.b32.start [1/16] %v435, 128
        %518 = vxpose.xlu0.b32.cont [2/16] 0.0, 128
        %519 = vxpose.xlu0.b32.cont [3/16] 0.0, 128
        %520 = vxpose.xlu0.b32.cont [4/16] 0.0, 128
        %521 = vxpose.xlu0.b32.cont [5/16] 0.0, 128
        %522 = vxpose.xlu0.b32.cont [6/16] 0.0, 128
        %523 = vxpose.xlu0.b32.cont [7/16] 0.0, 128
        %524 = vxpose.xlu0.b32.cont [8/16] 0.0, 128
        %525 = vxpose.xlu0.b32.cont [9/16] 0.0, 128
        %526 = vxpose.xlu0.b32.cont [10/16] 0.0, 128
        %527 = vxpose.xlu0.b32.cont [11/16] 0.0, 128
        %528 = vxpose.xlu0.b32.cont [12/16] 0.0, 128
        %529 = vxpose.xlu0.b32.cont [13/16] 0.0, 128
        %530 = vxpose.xlu0.b32.cont [14/16] 0.0, 128
        %531 = vxpose.xlu0.b32.cont [15/16] 0.0, 128
        %532 = vxpose.xlu0.b32.end [16/16] 0.0, 128
        %v533 = vpop.trf.xlu0
        %v534 = vpop.trf.xlu0
        %v535 = vpop.trf.xlu0
        %v536 = vpop.trf.xlu0
        %v537 = vpop.trf.xlu0
        %v538 = vpop.trf.xlu0
        %v539 = vpop.trf.xlu0
        %v540 = vpop.trf.xlu0
        %v541 = vpop.trf.xlu0
        %v542 = vpop.trf.xlu0
        %v543 = vpop.trf.xlu0
        %v544 = vpop.trf.xlu0
        %v545 = vpop.trf.xlu0
        %v546 = vpop.trf.xlu0
        %v547 = vpop.trf.xlu0
        %v548 = vpop.trf.xlu0
        %vm549 = vcmask 64512
        %v551 = vsel %vm549, %v533, 0
        %v554 = vsel %vm549, %v534, 0
        %v557 = vsel %vm549, %v535, 0
        %v560 = vsel %vm549, %v536, 0
        %562 = vmatprep.subr.mxu0 0.0
        %563 = vmatpush1.msra.mxu0 %v510
        %564 = vmatprep.subr.mxu0 0.0
        %565 = vmatpush1.msra.mxu0 0.0
        %566 = vmatprep.subr.mxu0 0.0
        %567 = vmatpush1.msra.mxu0 0.0
        %568 = vmatprep.subr.mxu0 0.0
        %569 = vmatpush1.msra.mxu0 0.0
        %570 = vmatprep.subr.mxu0 0.0
        %571 = vmatpush1.msra.mxu0 0.0
        %572 = vmatprep.subr.mxu0 0.0
        %573 = vmatpush1.msra.mxu0 0.0
        %574 = vmatprep.subr.mxu0 0.0
        %575 = vmatpush1.msra.mxu0 0.0
        %576 = vmatprep.subr.mxu0 0.0
        %577 = vmatpush1.msra.mxu0 0.0
        %578 = vmatprep.subr.mxu0 0.0
        %579 = vmatpush1.msra.mxu0 0.0
        %580 = vmatprep.subr.mxu0 0.0
        %581 = vmatpush1.msra.mxu0 0.0
        %582 = vmatprep.subr.mxu0 0.0
        %583 = vmatpush1.msra.mxu0 0.0
        %584 = vmatprep.subr.mxu0 0.0
        %585 = vmatpush1.msra.mxu0 0.0
        %586 = vmatprep.subr.mxu0 0.0
        %587 = vmatpush1.msra.mxu0 0.0
        %588 = vmatprep.subr.mxu0 0.0
        %589 = vmatpush1.msra.mxu0 0.0
        %590 = vmatprep.subr.mxu0 0.0
        %591 = vmatpush1.msra.mxu0 0.0
        %592 = vmatprep.subr.mxu0 0.0
        %593 = vmatpush1.msra.mxu0 0.0
        %594 = vmatprep.subr.mxu0 0.0
        %595 = vmatpush1.msra.mxu0 0.0
        %596 = vmatprep.subr.mxu0 0.0
        %597 = vmatpush1.msra.mxu0 0.0
        %598 = vmatprep.subr.mxu0 0.0
        %599 = vmatpush1.msra.mxu0 0.0
        %600 = vmatprep.subr.mxu0 0.0
        %601 = vmatpush1.msra.mxu0 0.0
        %602 = vmatprep.subr.mxu0 0.0
        %603 = vmatpush1.msra.mxu0 0.0
        %604 = vmatprep.subr.mxu0 0.0
        %605 = vmatpush1.msra.mxu0 0.0
        %606 = vmatprep.subr.mxu0 0.0
        %607 = vmatpush1.msra.mxu0 0.0
        %608 = vmatprep.subr.mxu0 0.0
        %609 = vmatpush1.msra.mxu0 0.0
        %610 = vmatprep.subr.mxu0 0.0
        %611 = vmatpush1.msra.mxu0 0.0
        %612 = vmatprep.subr.mxu0 0.0
        %613 = vmatpush1.msra.mxu0 0.0
        %614 = vmatprep.subr.mxu0 0.0
        %615 = vmatpush1.msra.mxu0 0.0
        %616 = vmatprep.subr.mxu0 0.0
        %617 = vmatpush1.msra.mxu0 0.0
        %618 = vmatprep.subr.mxu0 0.0
        %619 = vmatpush1.msra.mxu0 0.0
        %620 = vmatprep.subr.mxu0 0.0
        %621 = vmatpush1.msra.mxu0 0.0
        %622 = vmatprep.subr.mxu0 0.0
        %623 = vmatpush1.msra.mxu0 0.0
        %624 = vmatprep.subr.mxu0 0.0
        %625 = vmatpush1.msra.mxu0 0.0
        %626 = vmatprep.mubr.f32.mxu0 0.0
        %627 = vmatmul.mubr.f32.gmra.mrb[0].mxu0 %v551
        %v628 = vpop.f32.mrb[0].mxu0
        %v629 = vadd.f32 %v513, %v628
        %v630 = vpop.f32.mrb[0].mxu0
        %631 = vmatprep.mubr.f32.mxu0 0.0
        %632 = vmatmul.mubr.f32.gmra.mrb[0].mxu0 %v554
        %v633 = vpop.f32.mrb[0].mxu0
        %v634 = vadd.f32 %v514, %v633
        %v635 = vpop.f32.mrb[0].mxu0
        %636 = vmatprep.mubr.f32.mxu0 0.0
        %637 = vmatmul.mubr.f32.gmra.mrb[0].mxu0 %v557
        %v638 = vpop.f32.mrb[0].mxu0
        %v639 = vadd.f32 %v515, %v638
        %v640 = vpop.f32.mrb[0].mxu0
        %641 = vmatprep.mubr.f32.mxu0 0.0
        %642 = vmatmul.mubr.f32.gmra.mrb[0].mxu0 %v560
        %v643 = vpop.f32.mrb[0].mxu0
        %v644 = vadd.f32 %v516, %v643
        %v645 = vpop.f32.mrb[0].mxu0
        %646 = vdwg.mxu0
        %v647 = vsel %vm289, %v629, -inf
        %648 = vmax.xlane.f32.xlu0 %v647
        %v649 = vpop.xlane.xlu0 %648
        %v650 = vsel %vm289, %v634, -inf
        %651 = vmax.xlane.f32.xlu0 %v650
        %v652 = vpop.xlane.xlu0 %651
        %v653 = vsel %vm289, %v639, -inf
        %654 = vmax.xlane.f32.xlu0 %v653
        %v655 = vpop.xlane.xlu0 %654
        %v656 = vsel %vm289, %v644, -inf
        %657 = vmax.xlane.f32.xlu0 %v656
        %v658 = vpop.xlane.xlu0 %657
        %v659 = vsub.f32 %v629, %v649
        %v660 = vsub.f32 %v634, %v652
        %v661 = vsub.f32 %v639, %v655
        %v662 = vsub.f32 %v644, %v658
        %v663 = vmul.f32 %v659, 1.442695
        %v664 = vpow.pop %v663
        %v665 = vmul.f32 %v660, 1.442695
        %v666 = vpow.pop %v665
        %v667 = vmul.f32 %v661, 1.442695
        %v668 = vpow.pop %v667
        %v669 = vmul.f32 %v662, 1.442695
        %v670 = vpow.pop %v669
        %v671 = vsel %vm289, %v664, 0.0
        %672 = vadd.xlane.f32.xlu0 %v671
        %v673 = vpop.xlane.xlu0 %672
        %v674 = vsel %vm289, %v666, 0.0
        %675 = vadd.xlane.f32.xlu0 %v674
        %v676 = vpop.xlane.xlu0 %675
        %v677 = vsel %vm289, %v668, 0.0
        %678 = vadd.xlane.f32.xlu0 %v677
        %v679 = vpop.xlane.xlu0 %678
        %v680 = vsel %vm289, %v670, 0.0
        %681 = vadd.xlane.f32.xlu0 %v680
        %v682 = vpop.xlane.xlu0 %681
        %v683 = vrcp.pop %v673
        %v684 = vrcp.pop %v676
        %v685 = vrcp.pop %v679
        %v686 = vrcp.pop %v682
        %v687 = vmul.f32 %v664, %v683
        %v688 = vmul.f32 %v666, %v684
        %v689 = vmul.f32 %v668, %v685
        %v690 = vmul.f32 %v670, %v686
        %v692 = vsel %vm289, %v360, 0
        %v695 = vsel %vm289, %v687, 0
        %v698 = vsel %vm289, %v688, 0
        %v701 = vsel %vm289, %v689, 0
        %v704 = vsel %vm289, %v690, 0
        %706 = vmatprep.subr.mxu0 0.0
        %707 = vmatpush1.xpose.msra.mxu0 %v695
        %708 = vmatprep.subr.mxu0 0.0
        %709 = vmatpush1.xpose.msra.mxu0 %v698
        %710 = vmatprep.subr.mxu0 0.0
        %711 = vmatpush1.xpose.msra.mxu0 %v701
        %712 = vmatprep.subr.mxu0 0.0
        %713 = vmatpush1.xpose.msra.mxu0 %v704
        %714 = vmatprep.subr.mxu0 0.0
        %715 = vmatpush1.xpose.msra.mxu0 0.0
        %716 = vmatprep.subr.mxu0 0.0
        %717 = vmatpush1.xpose.msra.mxu0 0.0
        %718 = vmatprep.subr.mxu0 0.0
        %719 = vmatpush1.xpose.msra.mxu0 0.0
        %720 = vmatprep.subr.mxu0 0.0
        %721 = vmatpush1.xpose.msra.mxu0 0.0
        %722 = vmatprep.subr.mxu0 0.0
        %723 = vmatpush1.xpose.msra.mxu0 0.0
        %724 = vmatprep.subr.mxu0 0.0
        %725 = vmatpush1.xpose.msra.mxu0 0.0
        %726 = vmatprep.subr.mxu0 0.0
        %727 = vmatpush1.xpose.msra.mxu0 0.0
        %728 = vmatprep.subr.mxu0 0.0
        %729 = vmatpush1.xpose.msra.mxu0 0.0
        %730 = vmatprep.subr.mxu0 0.0
        %731 = vmatpush1.xpose.msra.mxu0 0.0
        %732 = vmatprep.subr.mxu0 0.0
        %733 = vmatpush1.xpose.msra.mxu0 0.0
        %734 = vmatprep.subr.mxu0 0.0
        %735 = vmatpush1.xpose.msra.mxu0 0.0
        %736 = vmatprep.subr.mxu0 0.0
        %737 = vmatpush1.xpose.msra.mxu0 0.0
        %738 = vmatprep.subr.mxu0 0.0
        %739 = vmatpush1.xpose.msra.mxu0 0.0
        %740 = vmatprep.subr.mxu0 0.0
        %741 = vmatpush1.xpose.msra.mxu0 0.0
        %742 = vmatprep.subr.mxu0 0.0
        %743 = vmatpush1.xpose.msra.mxu0 0.0
        %744 = vmatprep.subr.mxu0 0.0
        %745 = vmatpush1.xpose.msra.mxu0 0.0
        %746 = vmatprep.subr.mxu0 0.0
        %747 = vmatpush1.xpose.msra.mxu0 0.0
        %748 = vmatprep.subr.mxu0 0.0
        %749 = vmatpush1.xpose.msra.mxu0 0.0
        %750 = vmatprep.subr.mxu0 0.0
        %751 = vmatpush1.xpose.msra.mxu0 0.0
        %752 = vmatprep.subr.mxu0 0.0
        %753 = vmatpush1.xpose.msra.mxu0 0.0
        %754 = vmatprep.subr.mxu0 0.0
        %755 = vmatpush1.xpose.msra.mxu0 0.0
        %756 = vmatprep.subr.mxu0 0.0
        %757 = vmatpush1.xpose.msra.mxu0 0.0
        %758 = vmatprep.subr.mxu0 0.0
        %759 = vmatpush1.xpose.msra.mxu0 0.0
        %760 = vmatprep.subr.mxu0 0.0
        %761 = vmatpush1.xpose.msra.mxu0 0.0
        %762 = vmatprep.subr.mxu0 0.0
        %763 = vmatpush1.xpose.msra.mxu0 0.0
        %764 = vmatprep.subr.mxu0 0.0
        %765 = vmatpush1.xpose.msra.mxu0 0.0
        %766 = vmatprep.subr.mxu0 0.0
        %767 = vmatpush1.xpose.msra.mxu0 0.0
        %768 = vmatprep.subr.mxu0 0.0
        %769 = vmatpush1.xpose.msra.mxu0 0.0
        %770 = vmatprep.mubr.f32.mxu0 0.0
        %771 = vmatmul.mubr.f32.gmra.mrb[0].mxu0 %v692
        %v772 = vpop.f32.mrb[0].mxu0
        %v773 = vadd.f32 0.0, %v772
        %v774 = vpop.f32.mrb[0].mxu0
        %775 = vdwg.mxu0
        %v776 = vld [vmem:[#allocation7] sm:$0xff]
        %v777 = vld [vmem:[#allocation7 + $0x8] sm:$0xff]
        %v778 = vld [vmem:[#allocation7 + $0x10] sm:$0xff]
        %v779 = vld [vmem:[#allocation7 + $0x18] sm:$0xff]
        %v780 = vld [vmem:[%s3] sm:$0x1]
        %v782 = vlaneseq
        %v783 = vshrl.u32 %v782, 7
        %v784 = vsub.s32 0, %v783
        %v785 = vrot.slane %v780, %v784
        %v788 = vsel %vm289, %v773, 0
        %790 = vmatprep.subr.mxu0 0.0
        %791 = vmatpush1.msra.mxu0 %v776
        %792 = vmatprep.subr.mxu0 0.0
        %793 = vmatpush1.msra.mxu0 %v777
        %794 = vmatprep.subr.mxu0 0.0
        %795 = vmatpush1.msra.mxu0 %v778
        %796 = vmatprep.subr.mxu0 0.0
        %797 = vmatpush1.msra.mxu0 %v779
        %798 = vmatprep.subr.mxu0 0.0
        %799 = vmatpush1.msra.mxu0 0.0
        %800 = vmatprep.subr.mxu0 0.0
        %801 = vmatpush1.msra.mxu0 0.0
        %802 = vmatprep.subr.mxu0 0.0
        %803 = vmatpush1.msra.mxu0 0.0
        %804 = vmatprep.subr.mxu0 0.0
        %805 = vmatpush1.msra.mxu0 0.0
        %806 = vmatprep.subr.mxu0 0.0
        %807 = vmatpush1.msra.mxu0 0.0
        %808 = vmatprep.subr.mxu0 0.0
        %809 = vmatpush1.msra.mxu0 0.0
        %810 = vmatprep.subr.mxu0 0.0
        %811 = vmatpush1.msra.mxu0 0.0
        %812 = vmatprep.subr.mxu0 0.0
        %813 = vmatpush1.msra.mxu0 0.0
        %814 = vmatprep.subr.mxu0 0.0
        %815 = vmatpush1.msra.mxu0 0.0
        %816 = vmatprep.subr.mxu0 0.0
        %817 = vmatpush1.msra.mxu0 0.0
        %818 = vmatprep.subr.mxu0 0.0
        %819 = vmatpush1.msra.mxu0 0.0
        %820 = vmatprep.subr.mxu0 0.0
        %821 = vmatpush1.msra.mxu0 0.0
        %822 = vmatprep.subr.mxu0 0.0
        %823 = vmatpush1.msra.mxu0 0.0
        %824 = vmatprep.subr.mxu0 0.0
        %825 = vmatpush1.msra.mxu0 0.0
        %826 = vmatprep.subr.mxu0 0.0
        %827 = vmatpush1.msra.mxu0 0.0
        %828 = vmatprep.subr.mxu0 0.0
        %829 = vmatpush1.msra.mxu0 0.0
        %830 = vmatprep.subr.mxu0 0.0
        %831 = vmatpush1.msra.mxu0 0.0
        %832 = vmatprep.subr.mxu0 0.0
        %833 = vmatpush1.msra.mxu0 0.0
        %834 = vmatprep.subr.mxu0 0.0
        %835 = vmatpush1.msra.mxu0 0.0
        %836 = vmatprep.subr.mxu0 0.0
        %837 = vmatpush1.msra.mxu0 0.0
        %838 = vmatprep.subr.mxu0 0.0
        %839 = vmatpush1.msra.mxu0 0.0
        %840 = vmatprep.subr.mxu0 0.0
        %841 = vmatpush1.msra.mxu0 0.0
        %842 = vmatprep.subr.mxu0 0.0
        %843 = vmatpush1.msra.mxu0 0.0
        %844 = vmatprep.subr.mxu0 0.0
        %845 = vmatpush1.msra.mxu0 0.0
        %846 = vmatprep.subr.mxu0 0.0
        %847 = vmatpush1.msra.mxu0 0.0
        %848 = vmatprep.subr.mxu0 0.0
        %849 = vmatpush1.msra.mxu0 0.0
        %850 = vmatprep.subr.mxu0 0.0
        %851 = vmatpush1.msra.mxu0 0.0
        %852 = vmatprep.subr.mxu0 0.0
        %853 = vmatpush1.msra.mxu0 0.0
        %854 = vmatprep.mubr.f32.mxu0 0.0
        %855 = vmatmul.mubr.f32.gmra.mrb[0].mxu0 %v788
        %v856 = vpop.f32.mrb[0].mxu0
        %v857 = vadd.f32 %v785, %v856
        %v858 = vpop.f32.mrb[0].mxu0
        %859 = vdwg.mxu0
        %860 = vst.msk [vmem:[%s283] sm:$0xff] %vm289, %v857
        %s861 = sand.u32 %s142, 1
        %s862 = scalar_lea.sflag [#allocation4], %s861
        %s863 = sand.u32 %s142, 1
        %s864 = smul.addr %s863, 8
        %s865 = scalar_lea.vmem [#allocation10], %s864
        // Predicated region
        $region57: #{tpu_custom_call.1} parent=39 // pred_check
          %p866 = pneg %p152
        $region58: #{tpu_custom_call.1} parent=39 // pred_check_branch
          %868 = sbr.rel (%p866) target = $region60
        $region59: #{tpu_custom_call.1} parent=39 // pred_region
          %s870 = ssub.s32 128, 128
          %871 = vsyncadd %s862, %s870
          %s872 = smul.addr %s24, 128
          %s873 = scalar_lea.hbm %s5, %s872
          %s875 = sshll.u32 %s865, 4
          %s876 = int_to_ptr.vmem [resolvable:$true] %s875
          %878 = dma.vmem_to_hbm [thread:$0]  %s876, 128, %s873, %s862
        $region60: #{tpu_custom_call.1} parent=39 // pred_fallthru
          _
      $region40: #{tpu_custom_call.1} parent=5 // pred_fallthru
        _
      %p879 = scmp.le.s32.totalorder 2, %s19
      // Predicated region
      $region61: #{tpu_custom_call.1} parent=5 // pred_check
        %p880 = pneg %p879
      $region62: #{tpu_custom_call.1} parent=5 // pred_check_branch
        %882 = sbr.rel (%p880) target = $region64
      $region63: #{tpu_custom_call.1} parent=5 // pred_region
        %s883 = ssub.s32 %s19, 2
        // Predicated region
        $region65: #{tpu_custom_call.1} parent=63 // pred_check
          %p884 = pneg %p158
        $region66: #{tpu_custom_call.1} parent=63 // pred_check_branch
          %886 = sbr.rel (%p884) target = $region68
        $region67: #{tpu_custom_call.1} parent=63 // pred_region
          %s887 = sand.u32 %s143, 1
          %s888 = scalar_lea.sflag [#allocation4], %s887
          %s889 = sand.u32 %s143, 1
          %s890 = smul.addr %s889, 8
          %s891 = scalar_lea.vmem [#allocation10], %s890
          %892 = dma.done %s888, 128
        $region68: #{tpu_custom_call.1} parent=63 // pred_fallthru
          _
      $region64: #{tpu_custom_call.1} parent=5 // pred_fallthru
        _
    $region6: #{tpu_custom_call.1} parent=1 // loop_footer
      %s23 = sadd.s32 1, %s19
    $region7: #{tpu_custom_call.1} parent=1 // loop_footer_branch
      %18 = sbr.rel target = $region3
    $region8: #{tpu_custom_call.1} parent=1 // loop_exit
      _
    %893 = vsyncpa [#allocation3], 1
    %s894 = scalar_lea.sflag [#allocation3], 1
    %895 = vsyncpa %s894, 1
    %896 = vsyncpa [#allocation6], 1
    %897 = vsyncpa [#allocation9], 1
    %898 = vsyncpa [#allocation4], 1
    %s899 = scalar_lea.sflag [#allocation4], 1
    %900 = vsyncpa %s899, 1

</llo_original>
